<compile_context>
chip_gen: v6e
topology: v6e:2x2x1
jax: 0.10.0
libtpu: 0.0.40
codegen_flags: <defaults>
</compile_context>

<pallas_src>
import jax
import jax.numpy as jnp
from jax.experimental import pallas as pl
from jax.experimental.pallas import tpu as pltpu

LANE = 128
SUBLANE = 8


def _round_up(x, m):
    return ((x + m - 1) // m) * m


def _pad2d(a, rows, cols):
    """Zero-pad a 2-D array up to (rows, cols)."""
    out = jnp.zeros((rows, cols), a.dtype)
    return out.at[: a.shape[0], : a.shape[1]].set(a)


# ----------------------------------------------------------------------------
# Fused kernel: one-hot table gather + encoder MLP + decoder MLP
# Ref order: x, batch_idx, emb_table, <weights/biases...>, out
# ----------------------------------------------------------------------------
def _build_fused_kernel(n_enc_layers, n_dec_layers, tile_n, nb_pad, h0_pad):
    def kernel(*refs):
        x_ref, bidx_ref, table_ref = refs[:3]
        out_ref = refs[-1]
        it = iter(refs[3:-1])

        x = x_ref[...]                                    # (tile_n, d_in)  f32
        bidx = bidx_ref[...]                              # (tile_n, 1)     i32

        # Single one-hot matmul fetches BOTH per-batch layer-0 contributions
        # (encoder and decoder), with their biases already folded in.
        iota = jax.lax.broadcasted_iota(jnp.int32, (tile_n, nb_pad), 1)
        onehot = (iota == bidx).astype(jnp.float32)       # (tile_n, nb_pad)
        contrib = jnp.dot(onehot, table_ref[...],
                          preferred_element_type=jnp.float32)
        enc_contrib = contrib[:, :h0_pad]                 # includes enc b1
        dec_contrib = contrib[:, h0_pad:]                 # includes dec b1

        # ---------------- encoder: ReLU on EVERY layer ----------------
        w = next(it)[...]
        h = jnp.maximum(
            jnp.dot(x, w, preferred_element_type=jnp.float32) + enc_contrib,
            0.0)
        for _ in range(n_enc_layers - 1):
            w = next(it)[...]; b = next(it)[...]
            h = jnp.maximum(
                jnp.dot(h, w, preferred_element_type=jnp.float32) + b, 0.0)

        # ---------------- decoder: ReLU on all but the last layer ------
        w = next(it)[...]
        g = jnp.dot(h, w, preferred_element_type=jnp.float32) + dec_contrib
        if n_dec_layers > 1:
            g = jnp.maximum(g, 0.0)
        for l in range(n_dec_layers - 1):
            w = next(it)[...]; b = next(it)[...]
            g = jnp.dot(g, w, preferred_element_type=jnp.float32) + b
            if l < n_dec_layers - 2:
                g = jnp.maximum(g, 0.0)

        out_ref[...] = g.astype(out_ref.dtype)

    return kernel


# ----------------------------------------------------------------------------
# Forward pass (matches ConditionalAutoencoderML.forward)
# ----------------------------------------------------------------------------
def cond_ae_forward(params, x, batch_index, *, tile_n=1024):
    enc_layers = params["enc_layers"]
    dec_layers = params["dec_layers"]
    enc_emb = params["enc_emb"]
    dec_emb = params["dec_emb"]

    n, d_in = x.shape
    num_batches = enc_emb.shape[0]
    latent_dim = enc_layers[-1][0].shape[1]
    out_dim = dec_layers[-1][0].shape[1]

    nb_pad = _round_up(num_batches, SUBLANE)

    # Row tile: multiple of 8; capped so the grid has >= 2 steps whenever N
    # allows (keeps both v7x TensorCores busy via the "parallel" axis).
    tile_n = max(SUBLANE, _round_up(min(tile_n, max(n, 1)), SUBLANE))
    two_step_cap = max(SUBLANE, _round_up(-(-n // 2), SUBLANE))
    tile_n = min(tile_n, two_step_cap)
    n_pad = _round_up(max(n, 1), tile_n)

    # ---- per-row inputs: native lane width, row padding only if needed ----
    # NOTE: batch_index is assumed to be in [0, num_batches); out-of-range
    # values would silently select an all-zero table row.
    xf = x.astype(jnp.float32)
    bi = batch_index.reshape(n, 1).astype(jnp.int32)
    if n_pad == n:
        x_in, bidx = xf, bi
    else:
        x_in = jnp.zeros((n_pad, d_in), jnp.float32).at[:n].set(xf)
        bidx = jnp.zeros((n_pad, 1), jnp.int32).at[:n].set(bi)

    # ---- fold the embedding path: precompute per-batch layer-0 tables ----
    w1, b1 = enc_layers[0]
    h0 = w1.shape[1]
    h0_pad = _round_up(h0, LANE)
    enc_table = enc_emb.astype(jnp.float32) @ w1[d_in:, :] + b1   # (nb, h0)

    wd1, bd1 = dec_layers[0]
    g0 = wd1.shape[1]
    g0_pad = out_dim if len(dec_layers) == 1 else _round_up(g0, LANE)
    dec_table = dec_emb.astype(jnp.float32) @ wd1[latent_dim:, :] + bd1  # (nb, g0)

    table = jnp.zeros((nb_pad, h0_pad + g0_pad), jnp.float32)
    table = table.at[:num_batches, :h0].set(enc_table)
    table = table.at[:num_batches, h0_pad:h0_pad + g0].set(dec_table)

    # ---- resident weight operands (hidden dims lane-padded; x/out not) ----
    wops = []
    wops.append(_pad2d(w1[:d_in, :], d_in, h0_pad))       # enc W1 (x part), K=d_in
    prev_pad = h0_pad
    for (w, b) in enc_layers[1:]:
        dp = _round_up(w.shape[1], LANE)
        wops.append(_pad2d(w, prev_pad, dp))
        wops.append(_pad2d(b.reshape(1, -1), 1, dp))
        prev_pad = dp
    latent_pad = prev_pad

    wops.append(_pad2d(wd1[:latent_dim, :], latent_pad, g0_pad))  # dec W1 (z part)
    prev_pad = g0_pad
    n_dec = len(dec_layers)
    for li, (w, b) in enumerate(dec_layers[1:]):
        is_last = (li == n_dec - 2)
        dp = out_dim if is_last else _round_up(w.shape[1], LANE)
        wops.append(_pad2d(w, prev_pad, dp))
        wops.append(_pad2d(b.reshape(1, -1), 1, dp))
        prev_pad = dp
    assert prev_pad == out_dim

    kernel = _build_fused_kernel(len(enc_layers), n_dec, tile_n, nb_pad, h0_pad)

    grid = (n_pad // tile_n,)

    in_specs = [
        pl.BlockSpec((tile_n, d_in), lambda i: (i, 0)),   # x tile (native width)
        pl.BlockSpec((tile_n, 1), lambda i: (i, 0)),      # batch index tile
        pl.BlockSpec(table.shape, lambda i: (0, 0)),      # resident emb table
    ]
    for w in wops:
        in_specs.append(pl.BlockSpec(w.shape, lambda i: (0, 0)))  # resident

    out_specs = pl.BlockSpec((tile_n, out_dim), lambda i: (i, 0))

    # Advisory cost estimate for the XLA scheduler.
    flops = 2 * n_pad * nb_pad * table.shape[1]           # one-hot matmul
    for w in wops:
        if w.shape[0] > 1:
            flops += 2 * n_pad * w.shape[0] * w.shape[1]
    bytes_accessed = 4 * (x_in.size + bidx.size + n_pad * out_dim
                          + table.size + sum(int(w.size) for w in wops))
    cost = pl.CostEstimate(flops=int(flops), transcendentals=0,
                           bytes_accessed=int(bytes_accessed))

    out_full = pl.pallas_call(
        kernel,
        out_shape=jax.ShapeDtypeStruct((n_pad, out_dim), jnp.float32),
        grid=grid,
        in_specs=in_specs,
        out_specs=out_specs,
        compiler_params=pltpu.CompilerParams(
            dimension_semantics=("parallel",)),
        cost_estimate=cost,
    )(x_in, bidx, table, *wops)

    return out_full if n_pad == n else out_full[:n]


# ----------------------------------------------------------------------------
# Parameter construction (deterministic, PyTorch-default-style init)
# ----------------------------------------------------------------------------
def _linear_params(key, d_in, d_out):
    kw, kb = jax.random.split(key)
    bound = 1.0 / jnp.sqrt(d_in)
    w = jax.random.uniform(kw, (d_in, d_out), jnp.float32, -bound, bound)
    b = jax.random.uniform(kb, (d_out,), jnp.float32, -bound, bound)
    return w, b


def init_cond_ae_params(key, enc_in_channels, batch_dim, latent_dim,
                        hidden_dims, num_batches):
    keys = jax.random.split(key, 2 * (len(hidden_dims) + 1) + 2)
    ki = iter(keys)

    enc_layers = []
    d = enc_in_channels + batch_dim
    for h in hidden_dims:
        enc_layers.append(_linear_params(next(ki), d, h))
        d = h
    enc_layers.append(_linear_params(next(ki), d, latent_dim))

    dec_layers = []
    d = latent_dim + batch_dim
    for h in hidden_dims:
        dec_layers.append(_linear_params(next(ki), d, h))
        d = h
    dec_layers.append(_linear_params(next(ki), d, enc_in_channels))

    enc_emb = jax.random.normal(next(ki), (num_batches, batch_dim), jnp.float32)
    dec_emb = jax.random.normal(next(ki), (num_batches, batch_dim), jnp.float32)

    return {"enc_layers": enc_layers, "dec_layers": dec_layers,
            "enc_emb": enc_emb, "dec_emb": dec_emb}


# ----------------------------------------------------------------------------
# Pure-JAX reference (matches the PyTorch module op-for-op)
# ----------------------------------------------------------------------------
def cond_ae_forward_ref(params, x, batch_index):
    enc_info = jnp.squeeze(jnp.take(params["enc_emb"], batch_index, axis=0), 1)
    h = jnp.concatenate([x, enc_info], axis=-1)
    for (w, b) in params["enc_layers"]:              # ReLU on every enc layer
        h = jnp.maximum(h @ w + b, 0.0)
    dec_info = jnp.squeeze(jnp.take(params["dec_emb"], batch_index, axis=0), 1)
    g = jnp.concatenate([h, dec_info], axis=-1)
    n_dec = len(params["dec_layers"])
    for i, (w, b) in enumerate(params["dec_layers"]):
        g = g @ w + b
        if i < n_dec - 1:
            g = jnp.maximum(g, 0.0)
    return g


# ----------------------------------------------------------------------------
if __name__ == "__main__":
    enc_in_channels = 16
    batch_dim = 4
    latent_dim = 8
    hidden_dims = (32, 16)
    num_batches = 5
    N = 200          # non-multiple of 8: exercises row padding and a 2-step grid

    key = jax.random.PRNGKey(0)
    kp, kx, kb = jax.random.split(key, 3)

    params = init_cond_ae_params(kp, enc_in_channels, batch_dim, latent_dim,
                                 hidden_dims, num_batches)

    x = jax.random.normal(kx, (N, enc_in_channels), jnp.float32)
    batch_index = jax.random.randint(kb, (N, 1), 0, num_batches, jnp.int32)

    recon = cond_ae_forward(params, x, batch_index)   # tile_n auto-capped -> grid (2,)
    recon = jax.block_until_ready(recon)

    ref = cond_ae_forward_ref(params, x, batch_index)
    assert recon.shape == (N, enc_in_channels)
    assert jnp.allclose(recon, ref, atol=1e-4, rtol=1e-4), "mismatch vs reference"

    print("KERNEL_OK")
</pallas_src>

<mosaic_0001>
module attributes {stable_mosaic.version = 11 : i64} {
  func.func @kernel(%arg0: i32, %arg1: memref<104x16xf32, #tpu.memory_space<vmem>>, %arg2: memref<104x1xi32, #tpu.memory_space<vmem>>, %arg3: memref<8x256xf32, #tpu.memory_space<vmem>>, %arg4: memref<16x128xf32, #tpu.memory_space<vmem>>, %arg5: memref<128x128xf32, #tpu.memory_space<vmem>>, %arg6: memref<1x128xf32, #tpu.memory_space<vmem>>, %arg7: memref<128x128xf32, #tpu.memory_space<vmem>>, %arg8: memref<1x128xf32, #tpu.memory_space<vmem>>, %arg9: memref<128x128xf32, #tpu.memory_space<vmem>>, %arg10: memref<128x128xf32, #tpu.memory_space<vmem>>, %arg11: memref<1x128xf32, #tpu.memory_space<vmem>>, %arg12: memref<128x16xf32, #tpu.memory_space<vmem>>, %arg13: memref<1x16xf32, #tpu.memory_space<vmem>>, %arg14: memref<104x16xf32, #tpu.memory_space<vmem>>) attributes {dimension_semantics = [#tpu.dimension_semantics<parallel>], iteration_bounds = array<i64: 2>, scalar_prefetch = 0 : i64, scratch_operands = 0 : i64, tpu.core_type = #tpu.core_type<tc>, window_params = [{transform_indices = @transform_0, window_bounds = array<i64: 104, 16>}, {transform_indices = @transform_1, window_bounds = array<i64: 104, 1>}, {pipeline_mode = #tpu.pipeline_mode<synchronous>, transform_indices = @transform_2, window_bounds = array<i64: 8, 256>}, {pipeline_mode = #tpu.pipeline_mode<synchronous>, transform_indices = @transform_3, window_bounds = array<i64: 16, 128>}, {pipeline_mode = #tpu.pipeline_mode<synchronous>, transform_indices = @transform_4, window_bounds = array<i64: 128, 128>}, {pipeline_mode = #tpu.pipeline_mode<synchronous>, transform_indices = @transform_5, window_bounds = array<i64: 1, 128>}, {pipeline_mode = #tpu.pipeline_mode<synchronous>, transform_indices = @transform_6, window_bounds = array<i64: 128, 128>}, {pipeline_mode = #tpu.pipeline_mode<synchronous>, transform_indices = @transform_7, window_bounds = array<i64: 1, 128>}, {pipeline_mode = #tpu.pipeline_mode<synchronous>, transform_indices = @transform_8, window_bounds = array<i64: 128, 128>}, {pipeline_mode = #tpu.pipeline_mode<synchronous>, transform_indices = @transform_9, window_bounds = array<i64: 128, 128>}, {pipeline_mode = #tpu.pipeline_mode<synchronous>, transform_indices = @transform_10, window_bounds = array<i64: 1, 128>}, {pipeline_mode = #tpu.pipeline_mode<synchronous>, transform_indices = @transform_11, window_bounds = array<i64: 128, 16>}, {pipeline_mode = #tpu.pipeline_mode<synchronous>, transform_indices = @transform_12, window_bounds = array<i64: 1, 16>}, {transform_indices = @transform_13, window_bounds = array<i64: 104, 16>}]} {
    %c0 = arith.constant 0 : index
    %c0_0 = arith.constant 0 : index
    %0 = vector.load %arg1[%c0, %c0_0] : memref<104x16xf32, #tpu.memory_space<vmem>>, vector<104x16xf32>
    %c0_1 = arith.constant 0 : index
    %c0_2 = arith.constant 0 : index
    %1 = vector.load %arg2[%c0_1, %c0_2] : memref<104x1xi32, #tpu.memory_space<vmem>>, vector<104x1xi32>
    %2 = tpu.iota {dimensions = array<i32: 1>} : vector<104x8xi32>
    %3 = vector.broadcast %1 : vector<104x1xi32> to vector<104x8xi32>
    %4 = arith.cmpi eq, %2, %3 : vector<104x8xi32>
    %5 = arith.extui %4 : vector<104x8xi1> to vector<104x8xi32>
    %6 = arith.sitofp %5 : vector<104x8xi32> to vector<104x8xf32>
    %c0_3 = arith.constant 0 : index
    %c0_4 = arith.constant 0 : index
    %7 = vector.load %arg3[%c0_3, %c0_4] : memref<8x256xf32, #tpu.memory_space<vmem>>, vector<8x256xf32>
    %cst = arith.constant dense<0.000000e+00> : vector<104x256xf32>
    %8 = tpu.matmul %6, %7, %cst {dimension_numbers = #tpu.dot_dimension_numbers<[1], [0], [0], [1], [0, 0, 1, 1], [], []>} : vector<104x8xf32>, vector<8x256xf32>, vector<104x256xf32> -> vector<104x256xf32>
    %9 = vector.extract_strided_slice %8 {offsets = [0, 0], sizes = [104, 128], strides = [1, 1]} : vector<104x256xf32> to vector<104x128xf32>
    %10 = vector.extract_strided_slice %8 {offsets = [0, 128], sizes = [104, 128], strides = [1, 1]} : vector<104x256xf32> to vector<104x128xf32>
    %c0_5 = arith.constant 0 : index
    %c0_6 = arith.constant 0 : index
    %11 = vector.load %arg4[%c0_5, %c0_6] : memref<16x128xf32, #tpu.memory_space<vmem>>, vector<16x128xf32>
    %cst_7 = arith.constant dense<0.000000e+00> : vector<104x128xf32>
    %12 = tpu.matmul %0, %11, %cst_7 {dimension_numbers = #tpu.dot_dimension_numbers<[1], [0], [0], [1], [0, 0, 1, 1], [], []>} : vector<104x16xf32>, vector<16x128xf32>, vector<104x128xf32> -> vector<104x128xf32>
    %13 = arith.addf %12, %9 : vector<104x128xf32>
    %cst_8 = arith.constant 0.000000e+00 : f32
    %14 = vector.broadcast %cst_8 : f32 to vector<104x128xf32>
    %15 = arith.maximumf %13, %14 : vector<104x128xf32>
    %c0_9 = arith.constant 0 : index
    %c0_10 = arith.constant 0 : index
    %16 = vector.load %arg5[%c0_9, %c0_10] : memref<128x128xf32, #tpu.memory_space<vmem>>, vector<128x128xf32>
    %c0_11 = arith.constant 0 : index
    %c0_12 = arith.constant 0 : index
    %17 = vector.load %arg6[%c0_11, %c0_12] : memref<1x128xf32, #tpu.memory_space<vmem>>, vector<1x128xf32>
    %cst_13 = arith.constant dense<0.000000e+00> : vector<104x128xf32>
    %18 = tpu.matmul %15, %16, %cst_13 {dimension_numbers = #tpu.dot_dimension_numbers<[1], [0], [0], [1], [0, 0, 1, 1], [], []>} : vector<104x128xf32>, vector<128x128xf32>, vector<104x128xf32> -> vector<104x128xf32>
    %19 = vector.broadcast %17 : vector<1x128xf32> to vector<104x128xf32>
    %20 = arith.addf %18, %19 : vector<104x128xf32>
    %cst_14 = arith.constant 0.000000e+00 : f32
    %21 = vector.broadcast %cst_14 : f32 to vector<104x128xf32>
    %22 = arith.maximumf %20, %21 : vector<104x128xf32>
    %c0_15 = arith.constant 0 : index
    %c0_16 = arith.constant 0 : index
    %23 = vector.load %arg7[%c0_15, %c0_16] : memref<128x128xf32, #tpu.memory_space<vmem>>, vector<128x128xf32>
    %c0_17 = arith.constant 0 : index
    %c0_18 = arith.constant 0 : index
    %24 = vector.load %arg8[%c0_17, %c0_18] : memref<1x128xf32, #tpu.memory_space<vmem>>, vector<1x128xf32>
    %cst_19 = arith.constant dense<0.000000e+00> : vector<104x128xf32>
    %25 = tpu.matmul %22, %23, %cst_19 {dimension_numbers = #tpu.dot_dimension_numbers<[1], [0], [0], [1], [0, 0, 1, 1], [], []>} : vector<104x128xf32>, vector<128x128xf32>, vector<104x128xf32> -> vector<104x128xf32>
    %26 = vector.broadcast %24 : vector<1x128xf32> to vector<104x128xf32>
    %27 = arith.addf %25, %26 : vector<104x128xf32>
    %cst_20 = arith.constant 0.000000e+00 : f32
    %28 = vector.broadcast %cst_20 : f32 to vector<104x128xf32>
    %29 = arith.maximumf %27, %28 : vector<104x128xf32>
    %c0_21 = arith.constant 0 : index
    %c0_22 = arith.constant 0 : index
    %30 = vector.load %arg9[%c0_21, %c0_22] : memref<128x128xf32, #tpu.memory_space<vmem>>, vector<128x128xf32>
    %cst_23 = arith.constant dense<0.000000e+00> : vector<104x128xf32>
    %31 = tpu.matmul %29, %30, %cst_23 {dimension_numbers = #tpu.dot_dimension_numbers<[1], [0], [0], [1], [0, 0, 1, 1], [], []>} : vector<104x128xf32>, vector<128x128xf32>, vector<104x128xf32> -> vector<104x128xf32>
    %32 = arith.addf %31, %10 : vector<104x128xf32>
    %cst_24 = arith.constant 0.000000e+00 : f32
    %33 = vector.broadcast %cst_24 : f32 to vector<104x128xf32>
    %34 = arith.maximumf %32, %33 : vector<104x128xf32>
    %c0_25 = arith.constant 0 : index
    %c0_26 = arith.constant 0 : index
    %35 = vector.load %arg10[%c0_25, %c0_26] : memref<128x128xf32, #tpu.memory_space<vmem>>, vector<128x128xf32>
    %c0_27 = arith.constant 0 : index
    %c0_28 = arith.constant 0 : index
    %36 = vector.load %arg11[%c0_27, %c0_28] : memref<1x128xf32, #tpu.memory_space<vmem>>, vector<1x128xf32>
    %cst_29 = arith.constant dense<0.000000e+00> : vector<104x128xf32>
    %37 = tpu.matmul %34, %35, %cst_29 {dimension_numbers = #tpu.dot_dimension_numbers<[1], [0], [0], [1], [0, 0, 1, 1], [], []>} : vector<104x128xf32>, vector<128x128xf32>, vector<104x128xf32> -> vector<104x128xf32>
    %38 = vector.broadcast %36 : vector<1x128xf32> to vector<104x128xf32>
    %39 = arith.addf %37, %38 : vector<104x128xf32>
    %cst_30 = arith.constant 0.000000e+00 : f32
    %40 = vector.broadcast %cst_30 : f32 to vector<104x128xf32>
    %41 = arith.maximumf %39, %40 : vector<104x128xf32>
    %c0_31 = arith.constant 0 : index
    %c0_32 = arith.constant 0 : index
    %42 = vector.load %arg12[%c0_31, %c0_32] : memref<128x16xf32, #tpu.memory_space<vmem>>, vector<128x16xf32>
    %c0_33 = arith.constant 0 : index
    %c0_34 = arith.constant 0 : index
    %43 = vector.load %arg13[%c0_33, %c0_34] : memref<1x16xf32, #tpu.memory_space<vmem>>, vector<1x16xf32>
    %cst_35 = arith.constant dense<0.000000e+00> : vector<104x16xf32>
    %44 = tpu.matmul %41, %42, %cst_35 {dimension_numbers = #tpu.dot_dimension_numbers<[1], [0], [0], [1], [0, 0, 1, 1], [], []>} : vector<104x128xf32>, vector<128x16xf32>, vector<104x16xf32> -> vector<104x16xf32>
    %45 = vector.broadcast %43 : vector<1x16xf32> to vector<104x16xf32>
    %46 = arith.addf %44, %45 : vector<104x16xf32>
    %c0_36 = arith.constant 0 : index
    %c0_37 = arith.constant 0 : index
    %47 = vector.load %arg14[%c0_36, %c0_37] : memref<104x16xf32, #tpu.memory_space<vmem>>, vector<104x16xf32>
    tpu.vector_store %arg14[%c0_36, %c0_37], %46 {strides = array<i32>} : memref<104x16xf32, #tpu.memory_space<vmem>>, vector<104x16xf32>,
    return
  }
  func.func @transform_0(%arg0: i32) -> (i32, i32) {
    %c0_i32 = arith.constant 0 : i32
    %c0_i32_0 = arith.constant 0 : i32
    return %arg0, %c0_i32 : i32, i32
  }
  func.func @transform_1(%arg0: i32) -> (i32, i32) {
    %c0_i32 = arith.constant 0 : i32
    %c0_i32_0 = arith.constant 0 : i32
    return %arg0, %c0_i32 : i32, i32
  }
  func.func @transform_2(%arg0: i32) -> (i32, i32) {
    %c0_i32 = arith.constant 0 : i32
    %c0_i32_0 = arith.constant 0 : i32
    %c0_i32_1 = arith.constant 0 : i32
    return %c0_i32, %c0_i32_0 : i32, i32
  }
  func.func @transform_3(%arg0: i32) -> (i32, i32) {
    %c0_i32 = arith.constant 0 : i32
    %c0_i32_0 = arith.constant 0 : i32
    %c0_i32_1 = arith.constant 0 : i32
    return %c0_i32, %c0_i32_0 : i32, i32
  }
  func.func @transform_4(%arg0: i32) -> (i32, i32) {
    %c0_i32 = arith.constant 0 : i32
    %c0_i32_0 = arith.constant 0 : i32
    %c0_i32_1 = arith.constant 0 : i32
    return %c0_i32, %c0_i32_0 : i32, i32
  }
  func.func @transform_5(%arg0: i32) -> (i32, i32) {
    %c0_i32 = arith.constant 0 : i32
    %c0_i32_0 = arith.constant 0 : i32
    %c0_i32_1 = arith.constant 0 : i32
    return %c0_i32, %c0_i32_0 : i32, i32
  }
  func.func @transform_6(%arg0: i32) -> (i32, i32) {
    %c0_i32 = arith.constant 0 : i32
    %c0_i32_0 = arith.constant 0 : i32
    %c0_i32_1 = arith.constant 0 : i32
    return %c0_i32, %c0_i32_0 : i32, i32
  }
  func.func @transform_7(%arg0: i32) -> (i32, i32) {
    %c0_i32 = arith.constant 0 : i32
    %c0_i32_0 = arith.constant 0 : i32
    %c0_i32_1 = arith.constant 0 : i32
    return %c0_i32, %c0_i32_0 : i32, i32
  }
  func.func @transform_8(%arg0: i32) -> (i32, i32) {
    %c0_i32 = arith.constant 0 : i32
    %c0_i32_0 = arith.constant 0 : i32
    %c0_i32_1 = arith.constant 0 : i32
    return %c0_i32, %c0_i32_0 : i32, i32
  }
  func.func @transform_9(%arg0: i32) -> (i32, i32) {
    %c0_i32 = arith.constant 0 : i32
    %c0_i32_0 = arith.constant 0 : i32
    %c0_i32_1 = arith.constant 0 : i32
    return %c0_i32, %c0_i32_0 : i32, i32
  }
  func.func @transform_10(%arg0: i32) -> (i32, i32) {
    %c0_i32 = arith.constant 0 : i32
    %c0_i32_0 = arith.constant 0 : i32
    %c0_i32_1 = arith.constant 0 : i32
    return %c0_i32, %c0_i32_0 : i32, i32
  }
  func.func @transform_11(%arg0: i32) -> (i32, i32) {
    %c0_i32 = arith.constant 0 : i32
    %c0_i32_0 = arith.constant 0 : i32
    %c0_i32_1 = arith.constant 0 : i32
    return %c0_i32, %c0_i32_0 : i32, i32
  }
  func.func @transform_12(%arg0: i32) -> (i32, i32) {
    %c0_i32 = arith.constant 0 : i32
    %c0_i32_0 = arith.constant 0 : i32
    %c0_i32_1 = arith.constant 0 : i32
    return %c0_i32, %c0_i32_0 : i32, i32
  }
  func.func @transform_13(%arg0: i32) -> (i32, i32) {
    %c0_i32 = arith.constant 0 : i32
    %c0_i32_0 = arith.constant 0 : i32
    return %arg0, %c0_i32 : i32, i32
  }
}

</mosaic_0001>

<llo_original>
// kernel: tpu_custom_call.1
$region0: #{tpu_custom_call.1}
  #allocation0 [shape = 'u32[]', space=smem, size = 0x4, offset = 0x4, fixed_abs, tag = 'smem constant byte address 0x4 - core index']
  #allocation1 [shape = 'u32[144,128]{1,0:T(1,128)}', space=vmem, size = 0x12000, scoped, tag = 'internal scratch']
  %s0 = inlined_call_operand.vmem [shape: f32[208,16], index: 0, kind: input, shape index: {}]
  %s1 = inlined_call_operand.vmem [shape: s32[208,1], index: 1, kind: input, shape index: {}]
  %s2 = inlined_call_operand.vmem [shape: f32[8,256], index: 2, kind: input, shape index: {}]
  %s3 = inlined_call_operand.vmem [shape: f32[16,128], index: 3, kind: input, shape index: {}]
  %s4 = inlined_call_operand.vmem [shape: f32[128,128], index: 4, kind: input, shape index: {}]
  %s5 = inlined_call_operand.vmem [shape: f32[1,128], index: 5, kind: input, shape index: {}]
  %s6 = inlined_call_operand.vmem [shape: f32[128,128], index: 6, kind: input, shape index: {}]
  %s7 = inlined_call_operand.vmem [shape: f32[1,128], index: 7, kind: input, shape index: {}]
  %s8 = inlined_call_operand.vmem [shape: f32[128,128], index: 8, kind: input, shape index: {}]
  %s9 = inlined_call_operand.vmem [shape: f32[128,128], index: 9, kind: input, shape index: {}]
  %s10 = inlined_call_operand.vmem [shape: f32[1,128], index: 10, kind: input, shape index: {}]
  %s11 = inlined_call_operand.vmem [shape: f32[128,16], index: 11, kind: input, shape index: {}]
  %s12 = inlined_call_operand.vmem [shape: f32[1,16], index: 12, kind: input, shape index: {}]
  %s13 = inlined_call_operand.vmem [shape: f32[208,16], index: 13, kind: output, shape index: {}]
  %s14 = sld [smem:[#allocation0]]
  $region85: #{tpu_custom_call.1} parent=0
    _
  %s16 = ssub.s32 1, %s14
  %s17 = scalar_select 0, %s16, %s14
  loop: start=0, step=1, limit=4
  $region2: #{tpu_custom_call.1} parent=0 // loop_pre_header
    _
  $region3: #{tpu_custom_call.1} parent=0 // loop_header
    %s19 = sphi 0, %s23
    %p20 = scmp.ge.s32.totalorder %s19, 4
    %s29 = sphi 0, %s31
    %s32 = sphi 0, %s29
    %s33 = sphi 0, %s32
    %s49 = sphi 0, %s33
    %s55 = sphi 0, %s57
    %s58 = sphi 0, %s55
    %s59 = sphi 0, %s58
    %s75 = sphi 0, %s59
    %s79 = sphi 0, %s79
    %s81 = sphi 0, %s79
    %s82 = sphi 0, %s81
    %s96 = sphi 0, %s82
    %s100 = sphi 0, %s100
    %s102 = sphi 0, %s100
    %s103 = sphi 0, %s102
    %s117 = sphi 0, %s103
    %s121 = sphi 0, %s121
    %s123 = sphi 0, %s121
    %s124 = sphi 0, %s123
    %s138 = sphi 0, %s124
    %s142 = sphi 0, %s142
    %s144 = sphi 0, %s142
    %s145 = sphi 0, %s144
    %s159 = sphi 0, %s145
    %s163 = sphi 0, %s163
    %s165 = sphi 0, %s163
    %s166 = sphi 0, %s165
    %s180 = sphi 0, %s166
    %s184 = sphi 0, %s184
    %s186 = sphi 0, %s184
    %s187 = sphi 0, %s186
    %s201 = sphi 0, %s187
    %s205 = sphi 0, %s205
    %s207 = sphi 0, %s205
    %s208 = sphi 0, %s207
    %s222 = sphi 0, %s208
    %s226 = sphi 0, %s226
    %s228 = sphi 0, %s226
    %s229 = sphi 0, %s228
    %s243 = sphi 0, %s229
    %s247 = sphi 0, %s247
    %s249 = sphi 0, %s247
    %s250 = sphi 0, %s249
    %s264 = sphi 0, %s250
    %s268 = sphi 0, %s268
    %s270 = sphi 0, %s268
    %s271 = sphi 0, %s270
    %s285 = sphi 0, %s271
    %s289 = sphi 0, %s289
    %s291 = sphi 0, %s289
    %s292 = sphi 0, %s291
    %s306 = sphi 0, %s292
    %s312 = sphi 0, %s314
    %s315 = sphi 0, %s312
    %s316 = sphi 0, %s315
    %s332 = sphi 0, %s316
  $region4: #{tpu_custom_call.1} parent=0 // loop_header_branch
    %22 = sbr.rel (%p20) target = $region8
  $region5: #{tpu_custom_call.1} parent=0 // loop_body
    %s24 = ssub.s32 %s19, 1
    %s25 = ssub.s32 %s19, 2
    %s26 = sadd.s32 %s19, 1
    %s27 = ssub.s32 %s19, %s26
    %p28 = scmp.eq.s32.totalorder %s27, 0
    %s30 = sadd.s32 %s29, 1
    %s31 = scalar_select %p28, %s29, %s30
    %p34 = pneg %p28
    %p35 = scmp.eq.s32.totalorder %s19, 1
    %p36 = por %p34, %p35
    %p37 = scmp.ne.s32.totalorder %s29, %s32
    %p38 = scmp.eq.s32.totalorder %s19, 0
    %p39 = por %p37, %p38
    %p40 = scmp.ne.s32.totalorder %s29, %s32
    %p41 = scmp.eq.s32.totalorder %s24, 1
    %p42 = por %p40, %p41
    %p43 = scmp.ne.s32.totalorder %s32, %s33
    %p44 = scmp.eq.s32.totalorder %s24, 0
    %p45 = por %p43, %p44
    %p46 = scmp.ne.s32.totalorder %s32, %s33
    %p47 = scmp.eq.s32.totalorder %s25, 1
    %p48 = por %p46, %p47
    %p50 = scmp.ne.s32.totalorder %s33, %s49
    %p51 = scmp.eq.s32.totalorder %s25, 0
    %p52 = por %p50, %p51
    %s53 = ssub.s32 %s19, %s26
    %p54 = scmp.eq.s32.totalorder %s53, 0
    %s56 = sadd.s32 %s55, 1
    %s57 = scalar_select %p54, %s55, %s56
    %p60 = pneg %p54
    %p61 = scmp.eq.s32.totalorder %s19, 1
    %p62 = por %p60, %p61
    %p63 = scmp.ne.s32.totalorder %s55, %s58
    %p64 = scmp.eq.s32.totalorder %s19, 0
    %p65 = por %p63, %p64
    %p66 = scmp.ne.s32.totalorder %s55, %s58
    %p67 = scmp.eq.s32.totalorder %s24, 1
    %p68 = por %p66, %p67
    %p69 = scmp.ne.s32.totalorder %s58, %s59
    %p70 = scmp.eq.s32.totalorder %s24, 0
    %p71 = por %p69, %p70
    %p72 = scmp.ne.s32.totalorder %s58, %s59
    %p73 = scmp.eq.s32.totalorder %s25, 1
    %p74 = por %p72, %p73
    %p76 = scmp.ne.s32.totalorder %s59, %s75
    %p77 = scmp.eq.s32.totalorder %s25, 0
    %p78 = por %p76, %p77
    %s80 = sadd.s32 %s79, 1
    %p83 = scmp.eq.s32.totalorder %s19, 1
    %p84 = scmp.ne.s32.totalorder %s79, %s81
    %p85 = scmp.eq.s32.totalorder %s19, 0
    %p86 = por %p84, %p85
    %p87 = scmp.ne.s32.totalorder %s79, %s81
    %p88 = scmp.eq.s32.totalorder %s24, 1
    %p89 = por %p87, %p88
    %p90 = scmp.ne.s32.totalorder %s81, %s82
    %p91 = scmp.eq.s32.totalorder %s24, 0
    %p92 = por %p90, %p91
    %p93 = scmp.ne.s32.totalorder %s81, %s82
    %p94 = scmp.eq.s32.totalorder %s25, 1
    %p95 = por %p93, %p94
    %p97 = scmp.ne.s32.totalorder %s82, %s96
    %p98 = scmp.eq.s32.totalorder %s25, 0
    %p99 = por %p97, %p98
    %s101 = sadd.s32 %s100, 1
    %p104 = scmp.eq.s32.totalorder %s19, 1
    %p105 = scmp.ne.s32.totalorder %s100, %s102
    %p106 = scmp.eq.s32.totalorder %s19, 0
    %p107 = por %p105, %p106
    %p108 = scmp.ne.s32.totalorder %s100, %s102
    %p109 = scmp.eq.s32.totalorder %s24, 1
    %p110 = por %p108, %p109
    %p111 = scmp.ne.s32.totalorder %s102, %s103
    %p112 = scmp.eq.s32.totalorder %s24, 0
    %p113 = por %p111, %p112
    %p114 = scmp.ne.s32.totalorder %s102, %s103
    %p115 = scmp.eq.s32.totalorder %s25, 1
    %p116 = por %p114, %p115
    %p118 = scmp.ne.s32.totalorder %s103, %s117
    %p119 = scmp.eq.s32.totalorder %s25, 0
    %p120 = por %p118, %p119
    %s122 = sadd.s32 %s121, 1
    %p125 = scmp.eq.s32.totalorder %s19, 1
    %p126 = scmp.ne.s32.totalorder %s121, %s123
    %p127 = scmp.eq.s32.totalorder %s19, 0
    %p128 = por %p126, %p127
    %p129 = scmp.ne.s32.totalorder %s121, %s123
    %p130 = scmp.eq.s32.totalorder %s24, 1
    %p131 = por %p129, %p130
    %p132 = scmp.ne.s32.totalorder %s123, %s124
    %p133 = scmp.eq.s32.totalorder %s24, 0
    %p134 = por %p132, %p133
    %p135 = scmp.ne.s32.totalorder %s123, %s124
    %p136 = scmp.eq.s32.totalorder %s25, 1
    %p137 = por %p135, %p136
    %p139 = scmp.ne.s32.totalorder %s124, %s138
    %p140 = scmp.eq.s32.totalorder %s25, 0
    %p141 = por %p139, %p140
    %s143 = sadd.s32 %s142, 1
    %p146 = scmp.eq.s32.totalorder %s19, 1
    %p147 = scmp.ne.s32.totalorder %s142, %s144
    %p148 = scmp.eq.s32.totalorder %s19, 0
    %p149 = por %p147, %p148
    %p150 = scmp.ne.s32.totalorder %s142, %s144
    %p151 = scmp.eq.s32.totalorder %s24, 1
    %p152 = por %p150, %p151
    %p153 = scmp.ne.s32.totalorder %s144, %s145
    %p154 = scmp.eq.s32.totalorder %s24, 0
    %p155 = por %p153, %p154
    %p156 = scmp.ne.s32.totalorder %s144, %s145
    %p157 = scmp.eq.s32.totalorder %s25, 1
    %p158 = por %p156, %p157
    %p160 = scmp.ne.s32.totalorder %s145, %s159
    %p161 = scmp.eq.s32.totalorder %s25, 0
    %p162 = por %p160, %p161
    %s164 = sadd.s32 %s163, 1
    %p167 = scmp.eq.s32.totalorder %s19, 1
    %p168 = scmp.ne.s32.totalorder %s163, %s165
    %p169 = scmp.eq.s32.totalorder %s19, 0
    %p170 = por %p168, %p169
    %p171 = scmp.ne.s32.totalorder %s163, %s165
    %p172 = scmp.eq.s32.totalorder %s24, 1
    %p173 = por %p171, %p172
    %p174 = scmp.ne.s32.totalorder %s165, %s166
    %p175 = scmp.eq.s32.totalorder %s24, 0
    %p176 = por %p174, %p175
    %p177 = scmp.ne.s32.totalorder %s165, %s166
    %p178 = scmp.eq.s32.totalorder %s25, 1
    %p179 = por %p177, %p178
    %p181 = scmp.ne.s32.totalorder %s166, %s180
    %p182 = scmp.eq.s32.totalorder %s25, 0
    %p183 = por %p181, %p182
    %s185 = sadd.s32 %s184, 1
    %p188 = scmp.eq.s32.totalorder %s19, 1
    %p189 = scmp.ne.s32.totalorder %s184, %s186
    %p190 = scmp.eq.s32.totalorder %s19, 0
    %p191 = por %p189, %p190
    %p192 = scmp.ne.s32.totalorder %s184, %s186
    %p193 = scmp.eq.s32.totalorder %s24, 1
    %p194 = por %p192, %p193
    %p195 = scmp.ne.s32.totalorder %s186, %s187
    %p196 = scmp.eq.s32.totalorder %s24, 0
    %p197 = por %p195, %p196
    %p198 = scmp.ne.s32.totalorder %s186, %s187
    %p199 = scmp.eq.s32.totalorder %s25, 1
    %p200 = por %p198, %p199
    %p202 = scmp.ne.s32.totalorder %s187, %s201
    %p203 = scmp.eq.s32.totalorder %s25, 0
    %p204 = por %p202, %p203
    %s206 = sadd.s32 %s205, 1
    %p209 = scmp.eq.s32.totalorder %s19, 1
    %p210 = scmp.ne.s32.totalorder %s205, %s207
    %p211 = scmp.eq.s32.totalorder %s19, 0
    %p212 = por %p210, %p211
    %p213 = scmp.ne.s32.totalorder %s205, %s207
    %p214 = scmp.eq.s32.totalorder %s24, 1
    %p215 = por %p213, %p214
    %p216 = scmp.ne.s32.totalorder %s207, %s208
    %p217 = scmp.eq.s32.totalorder %s24, 0
    %p218 = por %p216, %p217
    %p219 = scmp.ne.s32.totalorder %s207, %s208
    %p220 = scmp.eq.s32.totalorder %s25, 1
    %p221 = por %p219, %p220
    %p223 = scmp.ne.s32.totalorder %s208, %s222
    %p224 = scmp.eq.s32.totalorder %s25, 0
    %p225 = por %p223, %p224
    %s227 = sadd.s32 %s226, 1
    %p230 = scmp.eq.s32.totalorder %s19, 1
    %p231 = scmp.ne.s32.totalorder %s226, %s228
    %p232 = scmp.eq.s32.totalorder %s19, 0
    %p233 = por %p231, %p232
    %p234 = scmp.ne.s32.totalorder %s226, %s228
    %p235 = scmp.eq.s32.totalorder %s24, 1
    %p236 = por %p234, %p235
    %p237 = scmp.ne.s32.totalorder %s228, %s229
    %p238 = scmp.eq.s32.totalorder %s24, 0
    %p239 = por %p237, %p238
    %p240 = scmp.ne.s32.totalorder %s228, %s229
    %p241 = scmp.eq.s32.totalorder %s25, 1
    %p242 = por %p240, %p241
    %p244 = scmp.ne.s32.totalorder %s229, %s243
    %p245 = scmp.eq.s32.totalorder %s25, 0
    %p246 = por %p244, %p245
    %s248 = sadd.s32 %s247, 1
    %p251 = scmp.eq.s32.totalorder %s19, 1
    %p252 = scmp.ne.s32.totalorder %s247, %s249
    %p253 = scmp.eq.s32.totalorder %s19, 0
    %p254 = por %p252, %p253
    %p255 = scmp.ne.s32.totalorder %s247, %s249
    %p256 = scmp.eq.s32.totalorder %s24, 1
    %p257 = por %p255, %p256
    %p258 = scmp.ne.s32.totalorder %s249, %s250
    %p259 = scmp.eq.s32.totalorder %s24, 0
    %p260 = por %p258, %p259
    %p261 = scmp.ne.s32.totalorder %s249, %s250
    %p262 = scmp.eq.s32.totalorder %s25, 1
    %p263 = por %p261, %p262
    %p265 = scmp.ne.s32.totalorder %s250, %s264
    %p266 = scmp.eq.s32.totalorder %s25, 0
    %p267 = por %p265, %p266
    %s269 = sadd.s32 %s268, 1
    %p272 = scmp.eq.s32.totalorder %s19, 1
    %p273 = scmp.ne.s32.totalorder %s268, %s270
    %p274 = scmp.eq.s32.totalorder %s19, 0
    %p275 = por %p273, %p274
    %p276 = scmp.ne.s32.totalorder %s268, %s270
    %p277 = scmp.eq.s32.totalorder %s24, 1
    %p278 = por %p276, %p277
    %p279 = scmp.ne.s32.totalorder %s270, %s271
    %p280 = scmp.eq.s32.totalorder %s24, 0
    %p281 = por %p279, %p280
    %p282 = scmp.ne.s32.totalorder %s270, %s271
    %p283 = scmp.eq.s32.totalorder %s25, 1
    %p284 = por %p282, %p283
    %p286 = scmp.ne.s32.totalorder %s271, %s285
    %p287 = scmp.eq.s32.totalorder %s25, 0
    %p288 = por %p286, %p287
    %s290 = sadd.s32 %s289, 1
    %p293 = scmp.eq.s32.totalorder %s19, 1
    %p294 = scmp.ne.s32.totalorder %s289, %s291
    %p295 = scmp.eq.s32.totalorder %s19, 0
    %p296 = por %p294, %p295
    %p297 = scmp.ne.s32.totalorder %s289, %s291
    %p298 = scmp.eq.s32.totalorder %s24, 1
    %p299 = por %p297, %p298
    %p300 = scmp.ne.s32.totalorder %s291, %s292
    %p301 = scmp.eq.s32.totalorder %s24, 0
    %p302 = por %p300, %p301
    %p303 = scmp.ne.s32.totalorder %s291, %s292
    %p304 = scmp.eq.s32.totalorder %s25, 1
    %p305 = por %p303, %p304
    %p307 = scmp.ne.s32.totalorder %s292, %s306
    %p308 = scmp.eq.s32.totalorder %s25, 0
    %p309 = por %p307, %p308
    %s310 = ssub.s32 %s19, %s26
    %p311 = scmp.eq.s32.totalorder %s310, 0
    %s313 = sadd.s32 %s312, 1
    %s314 = scalar_select %p311, %s312, %s313
    %p317 = pneg %p311
    %p318 = scmp.eq.s32.totalorder %s19, 1
    %p319 = por %p317, %p318
    %p320 = scmp.ne.s32.totalorder %s312, %s315
    %p321 = scmp.eq.s32.totalorder %s19, 0
    %p322 = por %p320, %p321
    %p323 = scmp.ne.s32.totalorder %s312, %s315
    %p324 = scmp.eq.s32.totalorder %s24, 1
    %p325 = por %p323, %p324
    %p326 = scmp.ne.s32.totalorder %s315, %s316
    %p327 = scmp.eq.s32.totalorder %s24, 0
    %p328 = por %p326, %p327
    %p329 = scmp.ne.s32.totalorder %s315, %s316
    %p330 = scmp.eq.s32.totalorder %s25, 1
    %p331 = por %p329, %p330
    %p333 = scmp.ne.s32.totalorder %s316, %s332
    %p334 = scmp.eq.s32.totalorder %s25, 0
    %p335 = por %p333, %p334
    %p336 = scmp.le.s32.totalorder 1, %s19
    %p337 = scmp.lt.s32.totalorder %s19, 3
    %p338 = pnand %p336, %p337
    %p339 = pneg %p338
    // Predicated region
    $region9: #{tpu_custom_call.1} parent=5 // pred_check
      _
    $region10: #{tpu_custom_call.1} parent=5 // pred_check_branch
      %341 = sbr.rel (%p338) target = $region12
    $region11: #{tpu_custom_call.1} parent=5 // pred_region
      %s342 = ssub.s32 %s19, 1
      // Predicated region
      $region13: #{tpu_custom_call.1} parent=11 // pred_check
        %p343 = pneg %p92
      $region14: #{tpu_custom_call.1} parent=11 // pred_check_branch
        %345 = sbr.rel (%p343) target = $region16
      $region15: #{tpu_custom_call.1} parent=11 // pred_region
        _
      $region16: #{tpu_custom_call.1} parent=11 // pred_fallthru
        _
      // Predicated region
      $region17: #{tpu_custom_call.1} parent=11 // pred_check
        %p346 = pneg %p113
      $region18: #{tpu_custom_call.1} parent=11 // pred_check_branch
        %348 = sbr.rel (%p346) target = $region20
      $region19: #{tpu_custom_call.1} parent=11 // pred_region
        _
      $region20: #{tpu_custom_call.1} parent=11 // pred_fallthru
        _
      // Predicated region
      $region21: #{tpu_custom_call.1} parent=11 // pred_check
        %p349 = pneg %p134
      $region22: #{tpu_custom_call.1} parent=11 // pred_check_branch
        %351 = sbr.rel (%p349) target = $region24
      $region23: #{tpu_custom_call.1} parent=11 // pred_region
        _
      $region24: #{tpu_custom_call.1} parent=11 // pred_fallthru
        _
      // Predicated region
      $region25: #{tpu_custom_call.1} parent=11 // pred_check
        %p352 = pneg %p155
      $region26: #{tpu_custom_call.1} parent=11 // pred_check_branch
        %354 = sbr.rel (%p352) target = $region28
      $region27: #{tpu_custom_call.1} parent=11 // pred_region
        _
      $region28: #{tpu_custom_call.1} parent=11 // pred_fallthru
        _
      // Predicated region
      $region29: #{tpu_custom_call.1} parent=11 // pred_check
        %p355 = pneg %p176
      $region30: #{tpu_custom_call.1} parent=11 // pred_check_branch
        %357 = sbr.rel (%p355) target = $region32
      $region31: #{tpu_custom_call.1} parent=11 // pred_region
        _
      $region32: #{tpu_custom_call.1} parent=11 // pred_fallthru
        _
      // Predicated region
      $region33: #{tpu_custom_call.1} parent=11 // pred_check
        %p358 = pneg %p197
      $region34: #{tpu_custom_call.1} parent=11 // pred_check_branch
        %360 = sbr.rel (%p358) target = $region36
      $region35: #{tpu_custom_call.1} parent=11 // pred_region
        _
      $region36: #{tpu_custom_call.1} parent=11 // pred_fallthru
        _
      // Predicated region
      $region37: #{tpu_custom_call.1} parent=11 // pred_check
        %p361 = pneg %p218
      $region38: #{tpu_custom_call.1} parent=11 // pred_check_branch
        %363 = sbr.rel (%p361) target = $region40
      $region39: #{tpu_custom_call.1} parent=11 // pred_region
        _
      $region40: #{tpu_custom_call.1} parent=11 // pred_fallthru
        _
      // Predicated region
      $region41: #{tpu_custom_call.1} parent=11 // pred_check
        %p364 = pneg %p239
      $region42: #{tpu_custom_call.1} parent=11 // pred_check_branch
        %366 = sbr.rel (%p364) target = $region44
      $region43: #{tpu_custom_call.1} parent=11 // pred_region
        _
      $region44: #{tpu_custom_call.1} parent=11 // pred_fallthru
        _
      // Predicated region
      $region45: #{tpu_custom_call.1} parent=11 // pred_check
        %p367 = pneg %p260
      $region46: #{tpu_custom_call.1} parent=11 // pred_check_branch
        %369 = sbr.rel (%p367) target = $region48
      $region47: #{tpu_custom_call.1} parent=11 // pred_region
        _
      $region48: #{tpu_custom_call.1} parent=11 // pred_fallthru
        _
      // Predicated region
      $region49: #{tpu_custom_call.1} parent=11 // pred_check
        %p370 = pneg %p281
      $region50: #{tpu_custom_call.1} parent=11 // pred_check_branch
        %372 = sbr.rel (%p370) target = $region52
      $region51: #{tpu_custom_call.1} parent=11 // pred_region
        _
      $region52: #{tpu_custom_call.1} parent=11 // pred_fallthru
        _
      // Predicated region
      $region53: #{tpu_custom_call.1} parent=11 // pred_check
        %p373 = pneg %p302
      $region54: #{tpu_custom_call.1} parent=11 // pred_check_branch
        %375 = sbr.rel (%p373) target = $region56
      $region55: #{tpu_custom_call.1} parent=11 // pred_region
        _
      $region56: #{tpu_custom_call.1} parent=11 // pred_fallthru
        _
    $region12: #{tpu_custom_call.1} parent=5 // pred_fallthru
      _
    %p376 = scmp.lt.s32.totalorder %s19, 2
    // Predicated region
    $region57: #{tpu_custom_call.1} parent=5 // pred_check
      %p377 = pneg %p376
    $region58: #{tpu_custom_call.1} parent=5 // pred_check_branch
      %379 = sbr.rel (%p377) target = $region60
    $region59: #{tpu_custom_call.1} parent=5 // pred_region
      // Predicated region
      $region61: #{tpu_custom_call.1} parent=59 // pred_check
        %p380 = pneg %p39
      $region62: #{tpu_custom_call.1} parent=59 // pred_check_branch
        %382 = sbr.rel (%p380) target = $region64
      $region63: #{tpu_custom_call.1} parent=59 // pred_region
        %s383 = smul.u32 13, %s19
        %p384 = scmp.lt.s32.totalorder %s383, 25
        %s385 = scalar_select %p384, %s383, 25
        %s386 = smul.addr %s385, 8
        %s387 = scalar_lea.vmem %s0, %s386
        %s388 = smul.u32 13, %s19
      $region64: #{tpu_custom_call.1} parent=59 // pred_fallthru
        _
      // Predicated region
      $region65: #{tpu_custom_call.1} parent=59 // pred_check
        %p389 = pneg %p65
      $region66: #{tpu_custom_call.1} parent=59 // pred_check_branch
        %391 = sbr.rel (%p389) target = $region68
      $region67: #{tpu_custom_call.1} parent=59 // pred_region
        %s392 = smul.u32 13, %s19
        %p393 = scmp.lt.s32.totalorder %s392, 25
        %s394 = scalar_select %p393, %s392, 25
        %s395 = smul.addr %s394, 8
        %s396 = scalar_lea.vmem %s1, %s395
        %s397 = smul.u32 13, %s19
      $region68: #{tpu_custom_call.1} parent=59 // pred_fallthru
        _
    $region60: #{tpu_custom_call.1} parent=5 // pred_fallthru
      _
    %p398 = scmp.le.s32.totalorder 1, %s19
    %p399 = scmp.lt.s32.totalorder %s19, 3
    %p400 = pnand %p398, %p399
    %p401 = pneg %p400
    // Predicated region
    $region69: #{tpu_custom_call.1} parent=5 // pred_check
      _
    $region70: #{tpu_custom_call.1} parent=5 // pred_check_branch
      %403 = sbr.rel (%p400) target = $region72
    $region71: #{tpu_custom_call.1} parent=5 // pred_region
      %s404 = ssub.s32 %s19, 1
      %s405 = smul.u32 13, %s24
      %p406 = scmp.lt.s32.totalorder %s405, 25
      %s407 = scalar_select %p406, %s405, 25
      %s408 = smul.addr %s407, 8
      %s409 = scalar_lea.vmem %s0, %s408
      %p410 = pneg %p45
      %p411 = pneg %p42
      %s412 = smul.u32 13, %s24
      %p413 = scmp.lt.s32.totalorder %s412, 25
      %s414 = scalar_select %p413, %s412, 25
      %s415 = smul.addr %s414, 8
      %s416 = scalar_lea.vmem %s1, %s415
      %p417 = pneg %p71
      %p418 = pneg %p68
      %p419 = pneg %p92
      %p420 = pneg %p89
      %p421 = pneg %p113
      %p422 = pneg %p110
      %p423 = pneg %p134
      %p424 = pneg %p131
      %p425 = pneg %p155
      %p426 = pneg %p152
      %p427 = pneg %p176
      %p428 = pneg %p173
      %p429 = pneg %p197
      %p430 = pneg %p194
      %p431 = pneg %p218
      %p432 = pneg %p215
      %p433 = pneg %p239
      %p434 = pneg %p236
      %p435 = pneg %p260
      %p436 = pneg %p257
      %p437 = pneg %p281
      %p438 = pneg %p278
      %p439 = pneg %p302
      %p440 = pneg %p299
      %p441 = pneg %p328
      %p442 = pneg %p325
      %s443 = smul.u32 13, %s24
      %p444 = scmp.lt.s32.totalorder %s443, 25
      %s445 = scalar_select %p444, %s443, 25
      %s446 = smul.addr %s445, 8
      %s447 = scalar_lea.vmem %s13, %s446
      %s448 = smul.u32 13, %s24
      %p449 = scmp.lt.s32.totalorder %s448, 25
      %s450 = scalar_select %p449, %s448, 25
      %s451 = smul.addr %s450, 8
      %s452 = scalar_lea.vmem %s0, %s451
      %s453 = smul.u32 13, %s24
      %s454 = smul.u32 13, %s24
      %p455 = scmp.lt.s32.totalorder %s454, 25
      %s456 = scalar_select %p455, %s454, 25
      %s457 = smul.addr %s456, 8
      %s458 = scalar_lea.vmem %s1, %s457
      %s459 = smul.u32 13, %s24
      %s460 = smul.u32 13, %s24
      %p461 = scmp.lt.s32.totalorder %s460, 25
      %s462 = scalar_select %p461, %s460, 25
      %s463 = smul.addr %s462, 8
      %s464 = scalar_lea.vmem %s13, %s463
      %s465 = smul.u32 13, %s24
      %v466 = vld [vmem:[%s452] sm:$0xff]
      %v467 = vld [vmem:[%s452 + $0x8] sm:$0xff]
      %v468 = vld [vmem:[%s452 + $0x10] sm:$0xff]
      %v469 = vld [vmem:[%s452 + $0x18] sm:$0xff]
      %v470 = vld [vmem:[%s452 + $0x20] sm:$0xff]
      %v471 = vld [vmem:[%s452 + $0x28] sm:$0xff]
      %v472 = vld [vmem:[%s452 + $0x30] sm:$0xff]
      %v473 = vld [vmem:[%s452 + $0x38] sm:$0xff]
      %v474 = vld [vmem:[%s452 + $0x40] sm:$0xff]
      %v475 = vld [vmem:[%s452 + $0x48] sm:$0xff]
      %v476 = vld [vmem:[%s452 + $0x50] sm:$0xff]
      %v477 = vld [vmem:[%s452 + $0x58] sm:$0xff]
      %v478 = vld [vmem:[%s452 + $0x60] sm:$0xff]
      %v479 = vld [vmem:[%s458] sm:$0xff]
      %v480 = vld [vmem:[%s458 + $0x8] sm:$0xff]
      %v481 = vld [vmem:[%s458 + $0x10] sm:$0xff]
      %v482 = vld [vmem:[%s458 + $0x18] sm:$0xff]
      %v483 = vld [vmem:[%s458 + $0x20] sm:$0xff]
      %v484 = vld [vmem:[%s458 + $0x28] sm:$0xff]
      %v485 = vld [vmem:[%s458 + $0x30] sm:$0xff]
      %v486 = vld [vmem:[%s458 + $0x38] sm:$0xff]
      %v487 = vld [vmem:[%s458 + $0x40] sm:$0xff]
      %v488 = vld [vmem:[%s458 + $0x48] sm:$0xff]
      %v489 = vld [vmem:[%s458 + $0x50] sm:$0xff]
      %v490 = vld [vmem:[%s458 + $0x58] sm:$0xff]
      %v491 = vld [vmem:[%s458 + $0x60] sm:$0xff]
      %v492 = vlaneseq
      %v493 = vand.u32 %v492, 127
      %494 = vset.pattern.permute.xlu0 0
      %495 = vperm.xlu0 %494, %v479
      %v496 = vpop.permute.xlu0 %495
      %497 = vset.pattern.permute.xlu0 0
      %498 = vperm.xlu0 %497, %v480
      %v499 = vpop.permute.xlu0 %498
      %500 = vset.pattern.permute.xlu0 0
      %501 = vperm.xlu0 %500, %v481
      %v502 = vpop.permute.xlu0 %501
      %503 = vset.pattern.permute.xlu0 0
      %504 = vperm.xlu0 %503, %v482
      %v505 = vpop.permute.xlu0 %504
      %506 = vset.pattern.permute.xlu0 0
      %507 = vperm.xlu0 %506, %v483
      %v508 = vpop.permute.xlu0 %507
      %509 = vset.pattern.permute.xlu0 0
      %510 = vperm.xlu0 %509, %v484
      %v511 = vpop.permute.xlu0 %510
      %512 = vset.pattern.permute.xlu0 0
      %513 = vperm.xlu0 %512, %v485
      %v514 = vpop.permute.xlu0 %513
      %515 = vset.pattern.permute.xlu0 0
      %516 = vperm.xlu0 %515, %v486
      %v517 = vpop.permute.xlu0 %516
      %518 = vset.pattern.permute.xlu0 0
      %519 = vperm.xlu0 %518, %v487
      %v520 = vpop.permute.xlu0 %519
      %521 = vset.pattern.permute.xlu0 0
      %522 = vperm.xlu0 %521, %v488
      %v523 = vpop.permute.xlu0 %522
      %524 = vset.pattern.permute.xlu0 0
      %525 = vperm.xlu0 %524, %v489
      %v526 = vpop.permute.xlu0 %525
      %527 = vset.pattern.permute.xlu0 0
      %528 = vperm.xlu0 %527, %v490
      %v529 = vpop.permute.xlu0 %528
      %530 = vset.pattern.permute.xlu0 0
      %531 = vperm.xlu0 %530, %v491
      %v532 = vpop.permute.xlu0 %531
      %vm533 = vcmp.eq.s32.totalorder %v493, %v496
      %vm534 = vcmp.eq.s32.totalorder %v493, %v499
      %vm535 = vcmp.eq.s32.totalorder %v493, %v502
      %vm536 = vcmp.eq.s32.totalorder %v493, %v505
      %vm537 = vcmp.eq.s32.totalorder %v493, %v508
      %vm538 = vcmp.eq.s32.totalorder %v493, %v511
      %vm539 = vcmp.eq.s32.totalorder %v493, %v514
      %vm540 = vcmp.eq.s32.totalorder %v493, %v517
      %vm541 = vcmp.eq.s32.totalorder %v493, %v520
      %vm542 = vcmp.eq.s32.totalorder %v493, %v523
      %vm543 = vcmp.eq.s32.totalorder %v493, %v526
      %vm544 = vcmp.eq.s32.totalorder %v493, %v529
      %vm545 = vcmp.eq.s32.totalorder %v493, %v532
      %v546 = vsel %vm533, 1, 0
      %v547 = vsel %vm534, 1, 0
      %v548 = vsel %vm535, 1, 0
      %v549 = vsel %vm536, 1, 0
      %v550 = vsel %vm537, 1, 0
      %v551 = vsel %vm538, 1, 0
      %v552 = vsel %vm539, 1, 0
      %v553 = vsel %vm540, 1, 0
      %v554 = vsel %vm541, 1, 0
      %v555 = vsel %vm542, 1, 0
      %v556 = vsel %vm543, 1, 0
      %v557 = vsel %vm544, 1, 0
      %v558 = vsel %vm545, 1, 0
      %v559 = vcvt.s32.f32 %v546
      %v560 = vcvt.s32.f32 %v547
      %v561 = vcvt.s32.f32 %v548
      %v562 = vcvt.s32.f32 %v549
      %v563 = vcvt.s32.f32 %v550
      %v564 = vcvt.s32.f32 %v551
      %v565 = vcvt.s32.f32 %v552
      %v566 = vcvt.s32.f32 %v553
      %v567 = vcvt.s32.f32 %v554
      %v568 = vcvt.s32.f32 %v555
      %v569 = vcvt.s32.f32 %v556
      %v570 = vcvt.s32.f32 %v557
      %v571 = vcvt.s32.f32 %v558
      %v572 = vld [vmem:[%s2] sm:$0xff]
      %v573 = vld [vmem:[%s2 + $0x8] sm:$0xff]
      %vm574 = vcmask 64512
      %v576 = vsel %vm574, %v559, 0
      %v579 = vsel %vm574, %v560, 0
      %v582 = vsel %vm574, %v561, 0
      %v585 = vsel %vm574, %v562, 0
      %v588 = vsel %vm574, %v563, 0
      %v591 = vsel %vm574, %v564, 0
      %v594 = vsel %vm574, %v565, 0
      %v597 = vsel %vm574, %v566, 0
      %v600 = vsel %vm574, %v567, 0
      %v603 = vsel %vm574, %v568, 0
      %v606 = vsel %vm574, %v569, 0
      %v609 = vsel %vm574, %v570, 0
      %v612 = vsel %vm574, %v571, 0
      %614 = vmatprep.subr.mxu0 0.0
      %615 = vmatpush1.msra.mxu0 0.0
      %616 = vmatprep.subr.mxu0 0.0
      %617 = vmatpush1.msra.mxu0 0.0
      %618 = vmatprep.subr.mxu0 0.0
      %619 = vmatpush1.msra.mxu0 0.0
      %620 = vmatprep.subr.mxu0 0.0
      %621 = vmatpush1.msra.mxu0 0.0
      %622 = vmatprep.subr.mxu0 0.0
      %623 = vmatpush1.msra.mxu0 0.0
      %624 = vmatprep.subr.mxu0 0.0
      %625 = vmatpush1.msra.mxu0 0.0
      %626 = vmatprep.subr.mxu0 0.0
      %627 = vmatpush1.msra.mxu0 0.0
      %628 = vmatprep.subr.mxu0 0.0
      %629 = vmatpush1.msra.mxu0 0.0
      %630 = vmatprep.subr.mxu0 0.0
      %631 = vmatpush1.msra.mxu0 0.0
      %632 = vmatprep.subr.mxu0 0.0
      %633 = vmatpush1.msra.mxu0 0.0
      %634 = vmatprep.subr.mxu0 0.0
      %635 = vmatpush1.msra.mxu0 0.0
      %636 = vmatprep.subr.mxu0 0.0
      %637 = vmatpush1.msra.mxu0 0.0
      %638 = vmatprep.subr.mxu0 0.0
      %639 = vmatpush1.msra.mxu0 0.0
      %640 = vmatprep.subr.mxu0 0.0
      %641 = vmatpush1.msra.mxu0 0.0
      %642 = vmatprep.subr.mxu0 0.0
      %643 = vmatpush1.msra.mxu0 0.0
      %644 = vmatprep.subr.mxu0 %v573
      %645 = vmatpush1.msra.mxu0 %v572
      %646 = vmatprep.subr.mxu0 0.0
      %647 = vmatpush2.msra.mxu0 0.0
      %648 = vmatprep.subr.mxu0 0.0
      %649 = vmatpush2.msra.mxu0 0.0
      %650 = vmatprep.subr.mxu0 0.0
      %651 = vmatpush2.msra.mxu0 0.0
      %652 = vmatprep.subr.mxu0 0.0
      %653 = vmatpush2.msra.mxu0 0.0
      %654 = vmatprep.subr.mxu0 0.0
      %655 = vmatpush2.msra.mxu0 0.0
      %656 = vmatprep.subr.mxu0 0.0
      %657 = vmatpush2.msra.mxu0 0.0
      %658 = vmatprep.subr.mxu0 0.0
      %659 = vmatpush2.msra.mxu0 0.0
      %660 = vmatprep.subr.mxu0 0.0
      %661 = vmatpush2.msra.mxu0 0.0
      %662 = vmatprep.subr.mxu0 0.0
      %663 = vmatpush2.msra.mxu0 0.0
      %664 = vmatprep.subr.mxu0 0.0
      %665 = vmatpush2.msra.mxu0 0.0
      %666 = vmatprep.subr.mxu0 0.0
      %667 = vmatpush2.msra.mxu0 0.0
      %668 = vmatprep.subr.mxu0 0.0
      %669 = vmatpush2.msra.mxu0 0.0
      %670 = vmatprep.subr.mxu0 0.0
      %671 = vmatpush2.msra.mxu0 0.0
      %672 = vmatprep.subr.mxu0 0.0
      %673 = vmatpush2.msra.mxu0 0.0
      %674 = vmatprep.subr.mxu0 0.0
      %675 = vmatpush2.msra.mxu0 0.0
      %676 = vmatprep.subr.mxu0 0.0
      %677 = vmatpush2.msra.mxu0 0.0
      %678 = vmatprep.mubr.f32.mxu0 0.0
      %679 = vmatmul.mubr.f32.gmra.mxu0 %v576
      %v680 = vpop.f32.mrf.mxu0
      %v681 = vadd.f32 0.0, %v680
      %v682 = vpop.f32.mrf.mxu0
      %v683 = vadd.f32 0.0, %v682
      %684 = vmatprep.mubr.f32.mxu0 0.0
      %685 = vmatmul.mubr.f32.gmra.mxu0 %v579
      %v686 = vpop.f32.mrf.mxu0
      %v687 = vadd.f32 0.0, %v686
      %v688 = vpop.f32.mrf.mxu0
      %v689 = vadd.f32 0.0, %v688
      %690 = vmatprep.mubr.f32.mxu0 0.0
      %691 = vmatmul.mubr.f32.gmra.mxu0 %v582
      %v692 = vpop.f32.mrf.mxu0
      %v693 = vadd.f32 0.0, %v692
      %v694 = vpop.f32.mrf.mxu0
      %v695 = vadd.f32 0.0, %v694
      %696 = vmatprep.mubr.f32.mxu0 0.0
      %697 = vmatmul.mubr.f32.gmra.mxu0 %v585
      %v698 = vpop.f32.mrf.mxu0
      %v699 = vadd.f32 0.0, %v698
      %v700 = vpop.f32.mrf.mxu0
      %v701 = vadd.f32 0.0, %v700
      %702 = vmatprep.mubr.f32.mxu0 0.0
      %703 = vmatmul.mubr.f32.gmra.mxu0 %v588
      %v704 = vpop.f32.mrf.mxu0
      %v705 = vadd.f32 0.0, %v704
      %v706 = vpop.f32.mrf.mxu0
      %v707 = vadd.f32 0.0, %v706
      %708 = vmatprep.mubr.f32.mxu0 0.0
      %709 = vmatmul.mubr.f32.gmra.mxu0 %v591
      %v710 = vpop.f32.mrf.mxu0
      %v711 = vadd.f32 0.0, %v710
      %v712 = vpop.f32.mrf.mxu0
      %v713 = vadd.f32 0.0, %v712
      %714 = vmatprep.mubr.f32.mxu0 0.0
      %715 = vmatmul.mubr.f32.gmra.mxu0 %v594
      %v716 = vpop.f32.mrf.mxu0
      %v717 = vadd.f32 0.0, %v716
      %v718 = vpop.f32.mrf.mxu0
      %v719 = vadd.f32 0.0, %v718
      %720 = vmatprep.mubr.f32.mxu0 0.0
      %721 = vmatmul.mubr.f32.gmra.mxu0 %v597
      %v722 = vpop.f32.mrf.mxu0
      %v723 = vadd.f32 0.0, %v722
      %v724 = vpop.f32.mrf.mxu0
      %v725 = vadd.f32 0.0, %v724
      %726 = vmatprep.mubr.f32.mxu0 0.0
      %727 = vmatmul.mubr.f32.gmra.mxu0 %v600
      %v728 = vpop.f32.mrf.mxu0
      %v729 = vadd.f32 0.0, %v728
      %v730 = vpop.f32.mrf.mxu0
      %v731 = vadd.f32 0.0, %v730
      %732 = vmatprep.mubr.f32.mxu0 0.0
      %733 = vmatmul.mubr.f32.gmra.mxu0 %v603
      %v734 = vpop.f32.mrf.mxu0
      %v735 = vadd.f32 0.0, %v734
      %v736 = vpop.f32.mrf.mxu0
      %v737 = vadd.f32 0.0, %v736
      %738 = vmatprep.mubr.f32.mxu0 0.0
      %739 = vmatmul.mubr.f32.gmra.mxu0 %v606
      %v740 = vpop.f32.mrf.mxu0
      %v741 = vadd.f32 0.0, %v740
      %v742 = vpop.f32.mrf.mxu0
      %v743 = vadd.f32 0.0, %v742
      %744 = vmatprep.mubr.f32.mxu0 0.0
      %745 = vmatmul.mubr.f32.gmra.mxu0 %v609
      %v746 = vpop.f32.mrf.mxu0
      %v747 = vadd.f32 0.0, %v746
      %v748 = vpop.f32.mrf.mxu0
      %v749 = vadd.f32 0.0, %v748
      %750 = vmatprep.mubr.f32.mxu0 0.0
      %751 = vmatmul.mubr.f32.gmra.mxu0 %v612
      %v752 = vpop.f32.mrf.mxu0
      %v753 = vadd.f32 0.0, %v752
      %v754 = vpop.f32.mrf.mxu0
      %v755 = vadd.f32 0.0, %v754
      %756 = vdwg.mxu0
      %v757 = vld [vmem:[%s3] sm:$0xff]
      %v758 = vld [vmem:[%s3 + $0x8] sm:$0xff]
      %vm759 = vcmask 130048
      %v761 = vsel %vm759, %v466, 0
      %v764 = vsel %vm759, %v467, 0
      %v767 = vsel %vm759, %v468, 0
      %v770 = vsel %vm759, %v469, 0
      %v773 = vsel %vm759, %v470, 0
      %v776 = vsel %vm759, %v471, 0
      %v779 = vsel %vm759, %v472, 0
      %v782 = vsel %vm759, %v473, 0
      %v785 = vsel %vm759, %v474, 0
      %v788 = vsel %vm759, %v475, 0
      %v791 = vsel %vm759, %v476, 0
      %v794 = vsel %vm759, %v477, 0
      %v797 = vsel %vm759, %v478, 0
      %799 = vmatprep.subr.mxu0 0.0
      %800 = vmatpush1.msra.mxu0 0.0
      %801 = vmatprep.subr.mxu0 0.0
      %802 = vmatpush1.msra.mxu0 0.0
      %803 = vmatprep.subr.mxu0 0.0
      %804 = vmatpush1.msra.mxu0 0.0
      %805 = vmatprep.subr.mxu0 0.0
      %806 = vmatpush1.msra.mxu0 0.0
      %807 = vmatprep.subr.mxu0 0.0
      %808 = vmatpush1.msra.mxu0 0.0
      %809 = vmatprep.subr.mxu0 0.0
      %810 = vmatpush1.msra.mxu0 0.0
      %811 = vmatprep.subr.mxu0 0.0
      %812 = vmatpush1.msra.mxu0 0.0
      %813 = vmatprep.subr.mxu0 0.0
      %814 = vmatpush1.msra.mxu0 0.0
      %815 = vmatprep.subr.mxu0 0.0
      %816 = vmatpush1.msra.mxu0 0.0
      %817 = vmatprep.subr.mxu0 0.0
      %818 = vmatpush1.msra.mxu0 0.0
      %819 = vmatprep.subr.mxu0 0.0
      %820 = vmatpush1.msra.mxu0 0.0
      %821 = vmatprep.subr.mxu0 0.0
      %822 = vmatpush1.msra.mxu0 0.0
      %823 = vmatprep.subr.mxu0 0.0
      %824 = vmatpush1.msra.mxu0 0.0
      %825 = vmatprep.subr.mxu0 0.0
      %826 = vmatpush1.msra.mxu0 0.0
      %827 = vmatprep.subr.mxu0 0.0
      %828 = vmatpush1.msra.mxu0 %v758
      %829 = vmatprep.subr.mxu0 0.0
      %830 = vmatpush1.msra.mxu0 %v757
      %831 = vmatprep.subr.mxu0 0.0
      %832 = vmatpush2.msra.mxu0 0.0
      %833 = vmatprep.subr.mxu0 0.0
      %834 = vmatpush2.msra.mxu0 0.0
      %835 = vmatprep.subr.mxu0 0.0
      %836 = vmatpush2.msra.mxu0 0.0
      %837 = vmatprep.subr.mxu0 0.0
      %838 = vmatpush2.msra.mxu0 0.0
      %839 = vmatprep.subr.mxu0 0.0
      %840 = vmatpush2.msra.mxu0 0.0
      %841 = vmatprep.subr.mxu0 0.0
      %842 = vmatpush2.msra.mxu0 0.0
      %843 = vmatprep.subr.mxu0 0.0
      %844 = vmatpush2.msra.mxu0 0.0
      %845 = vmatprep.subr.mxu0 0.0
      %846 = vmatpush2.msra.mxu0 0.0
      %847 = vmatprep.subr.mxu0 0.0
      %848 = vmatpush2.msra.mxu0 0.0
      %849 = vmatprep.subr.mxu0 0.0
      %850 = vmatpush2.msra.mxu0 0.0
      %851 = vmatprep.subr.mxu0 0.0
      %852 = vmatpush2.msra.mxu0 0.0
      %853 = vmatprep.subr.mxu0 0.0
      %854 = vmatpush2.msra.mxu0 0.0
      %855 = vmatprep.subr.mxu0 0.0
      %856 = vmatpush2.msra.mxu0 0.0
      %857 = vmatprep.subr.mxu0 0.0
      %858 = vmatpush2.msra.mxu0 0.0
      %859 = vmatprep.subr.mxu0 0.0
      %860 = vmatpush2.msra.mxu0 0.0
      %861 = vmatprep.subr.mxu0 0.0
      %862 = vmatpush2.msra.mxu0 0.0
      %863 = vmatprep.mubr.f32.mxu0 0.0
      %864 = vmatmul.mubr.f32.gmra.mxu0 %v761
      %v865 = vpop.f32.mrf.mxu0
      %v866 = vadd.f32 %v681, %v865
      %v867 = vpop.f32.mrf.mxu0
      %868 = vmatprep.mubr.f32.mxu0 0.0
      %869 = vmatmul.mubr.f32.gmra.mxu0 %v764
      %v870 = vpop.f32.mrf.mxu0
      %v871 = vadd.f32 %v687, %v870
      %v872 = vpop.f32.mrf.mxu0
      %873 = vmatprep.mubr.f32.mxu0 0.0
      %874 = vmatmul.mubr.f32.gmra.mxu0 %v767
      %v875 = vpop.f32.mrf.mxu0
      %v876 = vadd.f32 %v693, %v875
      %v877 = vpop.f32.mrf.mxu0
      %878 = vmatprep.mubr.f32.mxu0 0.0
      %879 = vmatmul.mubr.f32.gmra.mxu0 %v770
      %v880 = vpop.f32.mrf.mxu0
      %v881 = vadd.f32 %v699, %v880
      %v882 = vpop.f32.mrf.mxu0
      %883 = vmatprep.mubr.f32.mxu0 0.0
      %884 = vmatmul.mubr.f32.gmra.mxu0 %v773
      %v885 = vpop.f32.mrf.mxu0
      %v886 = vadd.f32 %v705, %v885
      %v887 = vpop.f32.mrf.mxu0
      %888 = vmatprep.mubr.f32.mxu0 0.0
      %889 = vmatmul.mubr.f32.gmra.mxu0 %v776
      %v890 = vpop.f32.mrf.mxu0
      %v891 = vadd.f32 %v711, %v890
      %v892 = vpop.f32.mrf.mxu0
      %893 = vmatprep.mubr.f32.mxu0 0.0
      %894 = vmatmul.mubr.f32.gmra.mxu0 %v779
      %v895 = vpop.f32.mrf.mxu0
      %v896 = vadd.f32 %v717, %v895
      %v897 = vpop.f32.mrf.mxu0
      %898 = vmatprep.mubr.f32.mxu0 0.0
      %899 = vmatmul.mubr.f32.gmra.mxu0 %v782
      %v900 = vpop.f32.mrf.mxu0
      %v901 = vadd.f32 %v723, %v900
      %v902 = vpop.f32.mrf.mxu0
      %903 = vmatprep.mubr.f32.mxu0 0.0
      %904 = vmatmul.mubr.f32.gmra.mxu0 %v785
      %v905 = vpop.f32.mrf.mxu0
      %v906 = vadd.f32 %v729, %v905
      %v907 = vpop.f32.mrf.mxu0
      %908 = vmatprep.mubr.f32.mxu0 0.0
      %909 = vmatmul.mubr.f32.gmra.mxu0 %v788
      %v910 = vpop.f32.mrf.mxu0
      %v911 = vadd.f32 %v735, %v910
      %v912 = vpop.f32.mrf.mxu0
      %913 = vmatprep.mubr.f32.mxu0 0.0
      %914 = vmatmul.mubr.f32.gmra.mxu0 %v791
      %v915 = vpop.f32.mrf.mxu0
      %v916 = vadd.f32 %v741, %v915
      %v917 = vpop.f32.mrf.mxu0
      %918 = vmatprep.mubr.f32.mxu0 0.0
      %919 = vmatmul.mubr.f32.gmra.mxu0 %v794
      %v920 = vpop.f32.mrf.mxu0
      %v921 = vadd.f32 %v747, %v920
      %v922 = vpop.f32.mrf.mxu0
      %923 = vmatprep.mubr.f32.mxu0 0.0
      %924 = vmatmul.mubr.f32.gmra.mxu0 %v797
      %v925 = vpop.f32.mrf.mxu0
      %v926 = vadd.f32 %v753, %v925
      %v927 = vpop.f32.mrf.mxu0
      %928 = vdwg.mxu0
      %v929 = vmax.f32 %v866, 0.0
      %v930 = vmax.f32 %v871, 0.0
      %v931 = vmax.f32 %v876, 0.0
      %v932 = vmax.f32 %v881, 0.0
      %v933 = vmax.f32 %v886, 0.0
      %v934 = vmax.f32 %v891, 0.0
      %v935 = vmax.f32 %v896, 0.0
      %v936 = vmax.f32 %v901, 0.0
      %v937 = vmax.f32 %v906, 0.0
      %v938 = vmax.f32 %v911, 0.0
      %v939 = vmax.f32 %v916, 0.0
      %v940 = vmax.f32 %v921, 0.0
      %v941 = vmax.f32 %v926, 0.0
      %v942 = vld [vmem:[%s4] sm:$0xff]
      %v943 = vld [vmem:[%s4 + $0x8] sm:$0xff]
      %v944 = vld [vmem:[%s4 + $0x10] sm:$0xff]
      %v945 = vld [vmem:[%s4 + $0x18] sm:$0xff]
      %v946 = vld [vmem:[%s4 + $0x20] sm:$0xff]
      %v947 = vld [vmem:[%s4 + $0x28] sm:$0xff]
      %v948 = vld [vmem:[%s4 + $0x30] sm:$0xff]
      %v949 = vld [vmem:[%s4 + $0x38] sm:$0xff]
      %v950 = vld [vmem:[%s4 + $0x40] sm:$0xff]
      %v951 = vld [vmem:[%s4 + $0x48] sm:$0xff]
      %v952 = vld [vmem:[%s4 + $0x50] sm:$0xff]
      %v953 = vld [vmem:[%s4 + $0x58] sm:$0xff]
      %v954 = vld [vmem:[%s4 + $0x60] sm:$0xff]
      %v955 = vld [vmem:[%s4 + $0x68] sm:$0xff]
      %v956 = vld [vmem:[%s4 + $0x70] sm:$0xff]
      %v957 = vld [vmem:[%s4 + $0x78] sm:$0xff]
      %v958 = vld [vmem:[%s5] sm:$0x1]
      %v960 = vlaneseq
      %v961 = vshrl.u32 %v960, 7
      %v962 = vsub.s32 0, %v961
      %v963 = vrot.slane %v958, %v962
      %965 = vmatprep.subr.mxu0 0.0
      %966 = vmatpush1.msra.mxu0 %v957
      %967 = vmatprep.subr.mxu0 0.0
      %968 = vmatpush1.msra.mxu0 %v956
      %969 = vmatprep.subr.mxu0 0.0
      %970 = vmatpush1.msra.mxu0 %v955
      %971 = vmatprep.subr.mxu0 0.0
      %972 = vmatpush1.msra.mxu0 %v954
      %973 = vmatprep.subr.mxu0 0.0
      %974 = vmatpush1.msra.mxu0 %v953
      %975 = vmatprep.subr.mxu0 0.0
      %976 = vmatpush1.msra.mxu0 %v952
      %977 = vmatprep.subr.mxu0 0.0
      %978 = vmatpush1.msra.mxu0 %v951
      %979 = vmatprep.subr.mxu0 0.0
      %980 = vmatpush1.msra.mxu0 %v950
      %981 = vmatprep.subr.mxu0 0.0
      %982 = vmatpush1.msra.mxu0 %v949
      %983 = vmatprep.subr.mxu0 0.0
      %984 = vmatpush1.msra.mxu0 %v948
      %985 = vmatprep.subr.mxu0 0.0
      %986 = vmatpush1.msra.mxu0 %v947
      %987 = vmatprep.subr.mxu0 0.0
      %988 = vmatpush1.msra.mxu0 %v946
      %989 = vmatprep.subr.mxu0 0.0
      %990 = vmatpush1.msra.mxu0 %v945
      %991 = vmatprep.subr.mxu0 0.0
      %992 = vmatpush1.msra.mxu0 %v944
      %993 = vmatprep.subr.mxu0 0.0
      %994 = vmatpush1.msra.mxu0 %v943
      %995 = vmatprep.subr.mxu0 0.0
      %996 = vmatpush1.msra.mxu0 %v942
      %997 = vmatprep.subr.mxu0 0.0
      %998 = vmatpush2.msra.mxu0 0.0
      %999 = vmatprep.subr.mxu0 0.0
      %1000 = vmatpush2.msra.mxu0 0.0
      %1001 = vmatprep.subr.mxu0 0.0
      %1002 = vmatpush2.msra.mxu0 0.0
      %1003 = vmatprep.subr.mxu0 0.0
      %1004 = vmatpush2.msra.mxu0 0.0
      %1005 = vmatprep.subr.mxu0 0.0
      %1006 = vmatpush2.msra.mxu0 0.0
      %1007 = vmatprep.subr.mxu0 0.0
      %1008 = vmatpush2.msra.mxu0 0.0
      %1009 = vmatprep.subr.mxu0 0.0
      %1010 = vmatpush2.msra.mxu0 0.0
      %1011 = vmatprep.subr.mxu0 0.0
      %1012 = vmatpush2.msra.mxu0 0.0
      %1013 = vmatprep.subr.mxu0 0.0
      %1014 = vmatpush2.msra.mxu0 0.0
      %1015 = vmatprep.subr.mxu0 0.0
      %1016 = vmatpush2.msra.mxu0 0.0
      %1017 = vmatprep.subr.mxu0 0.0
      %1018 = vmatpush2.msra.mxu0 0.0
      %1019 = vmatprep.subr.mxu0 0.0
      %1020 = vmatpush2.msra.mxu0 0.0
      %1021 = vmatprep.subr.mxu0 0.0
      %1022 = vmatpush2.msra.mxu0 0.0
      %1023 = vmatprep.subr.mxu0 0.0
      %1024 = vmatpush2.msra.mxu0 0.0
      %1025 = vmatprep.subr.mxu0 0.0
      %1026 = vmatpush2.msra.mxu0 0.0
      %1027 = vmatprep.subr.mxu0 0.0
      %1028 = vmatpush2.msra.mxu0 0.0
      %1029 = vmatprep.mubr.f32.mxu0 0.0
      %1030 = vmatmul.mubr.f32.gmra.mxu0 %v929
      %v1031 = vpop.f32.mrf.mxu0
      %v1032 = vadd.f32 %v963, %v1031
      %v1033 = vpop.f32.mrf.mxu0
      %1034 = vmatprep.mubr.f32.mxu0 0.0
      %1035 = vmatmul.mubr.f32.gmra.mxu0 %v930
      %v1036 = vpop.f32.mrf.mxu0
      %v1037 = vadd.f32 %v963, %v1036
      %v1038 = vpop.f32.mrf.mxu0
      %1039 = vmatprep.mubr.f32.mxu0 0.0
      %1040 = vmatmul.mubr.f32.gmra.mxu0 %v931
      %v1041 = vpop.f32.mrf.mxu0
      %v1042 = vadd.f32 %v963, %v1041
      %v1043 = vpop.f32.mrf.mxu0
      %1044 = vmatprep.mubr.f32.mxu0 0.0
      %1045 = vmatmul.mubr.f32.gmra.mxu0 %v932
      %v1046 = vpop.f32.mrf.mxu0
      %v1047 = vadd.f32 %v963, %v1046
      %v1048 = vpop.f32.mrf.mxu0
      %1049 = vmatprep.mubr.f32.mxu0 0.0
      %1050 = vmatmul.mubr.f32.gmra.mxu0 %v933
      %v1051 = vpop.f32.mrf.mxu0
      %v1052 = vadd.f32 %v963, %v1051
      %v1053 = vpop.f32.mrf.mxu0
      %1054 = vmatprep.mubr.f32.mxu0 0.0
      %1055 = vmatmul.mubr.f32.gmra.mxu0 %v934
      %v1056 = vpop.f32.mrf.mxu0
      %v1057 = vadd.f32 %v963, %v1056
      %v1058 = vpop.f32.mrf.mxu0
      %1059 = vmatprep.mubr.f32.mxu0 0.0
      %1060 = vmatmul.mubr.f32.gmra.mxu0 %v935
      %v1061 = vpop.f32.mrf.mxu0
      %v1062 = vadd.f32 %v963, %v1061
      %v1063 = vpop.f32.mrf.mxu0
      %1064 = vmatprep.mubr.f32.mxu0 0.0
      %1065 = vmatmul.mubr.f32.gmra.mxu0 %v936
      %v1066 = vpop.f32.mrf.mxu0
      %v1067 = vadd.f32 %v963, %v1066
      %v1068 = vpop.f32.mrf.mxu0
      %1069 = vmatprep.mubr.f32.mxu0 0.0
      %1070 = vmatmul.mubr.f32.gmra.mxu0 %v937
      %v1071 = vpop.f32.mrf.mxu0
      %v1072 = vadd.f32 %v963, %v1071
      %v1073 = vpop.f32.mrf.mxu0
      %1074 = vmatprep.mubr.f32.mxu0 0.0
      %1075 = vmatmul.mubr.f32.gmra.mxu0 %v938
      %v1076 = vpop.f32.mrf.mxu0
      %v1077 = vadd.f32 %v963, %v1076
      %v1078 = vpop.f32.mrf.mxu0
      %1079 = vmatprep.mubr.f32.mxu0 0.0
      %1080 = vmatmul.mubr.f32.gmra.mxu0 %v939
      %v1081 = vpop.f32.mrf.mxu0
      %v1082 = vadd.f32 %v963, %v1081
      %v1083 = vpop.f32.mrf.mxu0
      %1084 = vmatprep.mubr.f32.mxu0 0.0
      %1085 = vmatmul.mubr.f32.gmra.mxu0 %v940
      %v1086 = vpop.f32.mrf.mxu0
      %v1087 = vadd.f32 %v963, %v1086
      %v1088 = vpop.f32.mrf.mxu0
      %1089 = vmatprep.mubr.f32.mxu0 0.0
      %1090 = vmatmul.mubr.f32.gmra.mxu0 %v941
      %v1091 = vpop.f32.mrf.mxu0
      %v1092 = vadd.f32 %v963, %v1091
      %v1093 = vpop.f32.mrf.mxu0
      %1094 = vdwg.mxu0
      %v1095 = vmax.f32 %v1032, 0.0
      %v1096 = vmax.f32 %v1037, 0.0
      %v1097 = vmax.f32 %v1042, 0.0
      %v1098 = vmax.f32 %v1047, 0.0
      %v1099 = vmax.f32 %v1052, 0.0
      %v1100 = vmax.f32 %v1057, 0.0
      %v1101 = vmax.f32 %v1062, 0.0
      %v1102 = vmax.f32 %v1067, 0.0
      %v1103 = vmax.f32 %v1072, 0.0
      %v1104 = vmax.f32 %v1077, 0.0
      %v1105 = vmax.f32 %v1082, 0.0
      %v1106 = vmax.f32 %v1087, 0.0
      %v1107 = vmax.f32 %v1092, 0.0
      %v1108 = vld [vmem:[%s6] sm:$0xff]
      %v1109 = vld [vmem:[%s6 + $0x8] sm:$0xff]
      %v1110 = vld [vmem:[%s6 + $0x10] sm:$0xff]
      %v1111 = vld [vmem:[%s6 + $0x18] sm:$0xff]
      %v1112 = vld [vmem:[%s6 + $0x20] sm:$0xff]
      %v1113 = vld [vmem:[%s6 + $0x28] sm:$0xff]
      %v1114 = vld [vmem:[%s6 + $0x30] sm:$0xff]
      %v1115 = vld [vmem:[%s6 + $0x38] sm:$0xff]
      %v1116 = vld [vmem:[%s6 + $0x40] sm:$0xff]
      %v1117 = vld [vmem:[%s6 + $0x48] sm:$0xff]
      %v1118 = vld [vmem:[%s6 + $0x50] sm:$0xff]
      %v1119 = vld [vmem:[%s6 + $0x58] sm:$0xff]
      %v1120 = vld [vmem:[%s6 + $0x60] sm:$0xff]
      %v1121 = vld [vmem:[%s6 + $0x68] sm:$0xff]
      %v1122 = vld [vmem:[%s6 + $0x70] sm:$0xff]
      %v1123 = vld [vmem:[%s6 + $0x78] sm:$0xff]
      %v1124 = vld [vmem:[%s7] sm:$0x1]
      %v1126 = vlaneseq
      %v1127 = vshrl.u32 %v1126, 7
      %v1128 = vsub.s32 0, %v1127
      %v1129 = vrot.slane %v1124, %v1128
      %1131 = vmatprep.subr.mxu0 0.0
      %1132 = vmatpush1.msra.mxu0 %v1123
      %1133 = vmatprep.subr.mxu0 0.0
      %1134 = vmatpush1.msra.mxu0 %v1122
      %1135 = vmatprep.subr.mxu0 0.0
      %1136 = vmatpush1.msra.mxu0 %v1121
      %1137 = vmatprep.subr.mxu0 0.0
      %1138 = vmatpush1.msra.mxu0 %v1120
      %1139 = vmatprep.subr.mxu0 0.0
      %1140 = vmatpush1.msra.mxu0 %v1119
      %1141 = vmatprep.subr.mxu0 0.0
      %1142 = vmatpush1.msra.mxu0 %v1118
      %1143 = vmatprep.subr.mxu0 0.0
      %1144 = vmatpush1.msra.mxu0 %v1117
      %1145 = vmatprep.subr.mxu0 0.0
      %1146 = vmatpush1.msra.mxu0 %v1116
      %1147 = vmatprep.subr.mxu0 0.0
      %1148 = vmatpush1.msra.mxu0 %v1115
      %1149 = vmatprep.subr.mxu0 0.0
      %1150 = vmatpush1.msra.mxu0 %v1114
      %1151 = vmatprep.subr.mxu0 0.0
      %1152 = vmatpush1.msra.mxu0 %v1113
      %1153 = vmatprep.subr.mxu0 0.0
      %1154 = vmatpush1.msra.mxu0 %v1112
      %1155 = vmatprep.subr.mxu0 0.0
      %1156 = vmatpush1.msra.mxu0 %v1111
      %1157 = vmatprep.subr.mxu0 0.0
      %1158 = vmatpush1.msra.mxu0 %v1110
      %1159 = vmatprep.subr.mxu0 0.0
      %1160 = vmatpush1.msra.mxu0 %v1109
      %1161 = vmatprep.subr.mxu0 0.0
      %1162 = vmatpush1.msra.mxu0 %v1108
      %1163 = vmatprep.subr.mxu0 0.0
      %1164 = vmatpush2.msra.mxu0 0.0
      %1165 = vmatprep.subr.mxu0 0.0
      %1166 = vmatpush2.msra.mxu0 0.0
      %1167 = vmatprep.subr.mxu0 0.0
      %1168 = vmatpush2.msra.mxu0 0.0
      %1169 = vmatprep.subr.mxu0 0.0
      %1170 = vmatpush2.msra.mxu0 0.0
      %1171 = vmatprep.subr.mxu0 0.0
      %1172 = vmatpush2.msra.mxu0 0.0
      %1173 = vmatprep.subr.mxu0 0.0
      %1174 = vmatpush2.msra.mxu0 0.0
      %1175 = vmatprep.subr.mxu0 0.0
      %1176 = vmatpush2.msra.mxu0 0.0
      %1177 = vmatprep.subr.mxu0 0.0
      %1178 = vmatpush2.msra.mxu0 0.0
      %1179 = vmatprep.subr.mxu0 0.0
      %1180 = vmatpush2.msra.mxu0 0.0
      %1181 = vmatprep.subr.mxu0 0.0
      %1182 = vmatpush2.msra.mxu0 0.0
      %1183 = vmatprep.subr.mxu0 0.0
      %1184 = vmatpush2.msra.mxu0 0.0
      %1185 = vmatprep.subr.mxu0 0.0
      %1186 = vmatpush2.msra.mxu0 0.0
      %1187 = vmatprep.subr.mxu0 0.0
      %1188 = vmatpush2.msra.mxu0 0.0
      %1189 = vmatprep.subr.mxu0 0.0
      %1190 = vmatpush2.msra.mxu0 0.0
      %1191 = vmatprep.subr.mxu0 0.0
      %1192 = vmatpush2.msra.mxu0 0.0
      %1193 = vmatprep.subr.mxu0 0.0
      %1194 = vmatpush2.msra.mxu0 0.0
      %1195 = vmatprep.mubr.f32.mxu0 0.0
      %1196 = vmatmul.mubr.f32.gmra.mxu0 %v1095
      %v1197 = vpop.f32.mrf.mxu0
      %v1198 = vadd.f32 %v1129, %v1197
      %v1199 = vpop.f32.mrf.mxu0
      %1200 = vmatprep.mubr.f32.mxu0 0.0
      %1201 = vmatmul.mubr.f32.gmra.mxu0 %v1096
      %v1202 = vpop.f32.mrf.mxu0
      %v1203 = vadd.f32 %v1129, %v1202
      %v1204 = vpop.f32.mrf.mxu0
      %1205 = vmatprep.mubr.f32.mxu0 0.0
      %1206 = vmatmul.mubr.f32.gmra.mxu0 %v1097
      %v1207 = vpop.f32.mrf.mxu0
      %v1208 = vadd.f32 %v1129, %v1207
      %v1209 = vpop.f32.mrf.mxu0
      %1210 = vmatprep.mubr.f32.mxu0 0.0
      %1211 = vmatmul.mubr.f32.gmra.mxu0 %v1098
      %v1212 = vpop.f32.mrf.mxu0
      %v1213 = vadd.f32 %v1129, %v1212
      %v1214 = vpop.f32.mrf.mxu0
      %1215 = vmatprep.mubr.f32.mxu0 0.0
      %1216 = vmatmul.mubr.f32.gmra.mxu0 %v1099
      %v1217 = vpop.f32.mrf.mxu0
      %v1218 = vadd.f32 %v1129, %v1217
      %v1219 = vpop.f32.mrf.mxu0
      %1220 = vmatprep.mubr.f32.mxu0 0.0
      %1221 = vmatmul.mubr.f32.gmra.mxu0 %v1100
      %v1222 = vpop.f32.mrf.mxu0
      %v1223 = vadd.f32 %v1129, %v1222
      %v1224 = vpop.f32.mrf.mxu0
      %1225 = vmatprep.mubr.f32.mxu0 0.0
      %1226 = vmatmul.mubr.f32.gmra.mxu0 %v1101
      %v1227 = vpop.f32.mrf.mxu0
      %v1228 = vadd.f32 %v1129, %v1227
      %v1229 = vpop.f32.mrf.mxu0
      %1230 = vmatprep.mubr.f32.mxu0 0.0
      %1231 = vmatmul.mubr.f32.gmra.mxu0 %v1102
      %v1232 = vpop.f32.mrf.mxu0
      %v1233 = vadd.f32 %v1129, %v1232
      %v1234 = vpop.f32.mrf.mxu0
      %1235 = vmatprep.mubr.f32.mxu0 0.0
      %1236 = vmatmul.mubr.f32.gmra.mxu0 %v1103
      %v1237 = vpop.f32.mrf.mxu0
      %v1238 = vadd.f32 %v1129, %v1237
      %v1239 = vpop.f32.mrf.mxu0
      %1240 = vmatprep.mubr.f32.mxu0 0.0
      %1241 = vmatmul.mubr.f32.gmra.mxu0 %v1104
      %v1242 = vpop.f32.mrf.mxu0
      %v1243 = vadd.f32 %v1129, %v1242
      %v1244 = vpop.f32.mrf.mxu0
      %1245 = vmatprep.mubr.f32.mxu0 0.0
      %1246 = vmatmul.mubr.f32.gmra.mxu0 %v1105
      %v1247 = vpop.f32.mrf.mxu0
      %v1248 = vadd.f32 %v1129, %v1247
      %v1249 = vpop.f32.mrf.mxu0
      %1250 = vmatprep.mubr.f32.mxu0 0.0
      %1251 = vmatmul.mubr.f32.gmra.mxu0 %v1106
      %v1252 = vpop.f32.mrf.mxu0
      %v1253 = vadd.f32 %v1129, %v1252
      %v1254 = vpop.f32.mrf.mxu0
      %1255 = vmatprep.mubr.f32.mxu0 0.0
      %1256 = vmatmul.mubr.f32.gmra.mxu0 %v1107
      %v1257 = vpop.f32.mrf.mxu0
      %v1258 = vadd.f32 %v1129, %v1257
      %v1259 = vpop.f32.mrf.mxu0
      %1260 = vdwg.mxu0
      %v1261 = vmax.f32 %v1198, 0.0
      %v1262 = vmax.f32 %v1203, 0.0
      %v1263 = vmax.f32 %v1208, 0.0
      %v1264 = vmax.f32 %v1213, 0.0
      %v1265 = vmax.f32 %v1218, 0.0
      %v1266 = vmax.f32 %v1223, 0.0
      %v1267 = vmax.f32 %v1228, 0.0
      %v1268 = vmax.f32 %v1233, 0.0
      %v1269 = vmax.f32 %v1238, 0.0
      %v1270 = vmax.f32 %v1243, 0.0
      %v1271 = vmax.f32 %v1248, 0.0
      %v1272 = vmax.f32 %v1253, 0.0
      %v1273 = vmax.f32 %v1258, 0.0
      %v1274 = vld [vmem:[%s8] sm:$0xff]
      %v1275 = vld [vmem:[%s8 + $0x8] sm:$0xff]
      %v1276 = vld [vmem:[%s8 + $0x10] sm:$0xff]
      %v1277 = vld [vmem:[%s8 + $0x18] sm:$0xff]
      %v1278 = vld [vmem:[%s8 + $0x20] sm:$0xff]
      %v1279 = vld [vmem:[%s8 + $0x28] sm:$0xff]
      %v1280 = vld [vmem:[%s8 + $0x30] sm:$0xff]
      %v1281 = vld [vmem:[%s8 + $0x38] sm:$0xff]
      %v1282 = vld [vmem:[%s8 + $0x40] sm:$0xff]
      %v1283 = vld [vmem:[%s8 + $0x48] sm:$0xff]
      %v1284 = vld [vmem:[%s8 + $0x50] sm:$0xff]
      %v1285 = vld [vmem:[%s8 + $0x58] sm:$0xff]
      %v1286 = vld [vmem:[%s8 + $0x60] sm:$0xff]
      %v1287 = vld [vmem:[%s8 + $0x68] sm:$0xff]
      %v1288 = vld [vmem:[%s8 + $0x70] sm:$0xff]
      %v1289 = vld [vmem:[%s8 + $0x78] sm:$0xff]
      %1290 = vmatprep.subr.mxu0 0.0
      %1291 = vmatpush1.msra.mxu0 %v1289
      %1292 = vmatprep.subr.mxu0 0.0
      %1293 = vmatpush1.msra.mxu0 %v1288
      %1294 = vmatprep.subr.mxu0 0.0
      %1295 = vmatpush1.msra.mxu0 %v1287
      %1296 = vmatprep.subr.mxu0 0.0
      %1297 = vmatpush1.msra.mxu0 %v1286
      %1298 = vmatprep.subr.mxu0 0.0
      %1299 = vmatpush1.msra.mxu0 %v1285
      %1300 = vmatprep.subr.mxu0 0.0
      %1301 = vmatpush1.msra.mxu0 %v1284
      %1302 = vmatprep.subr.mxu0 0.0
      %1303 = vmatpush1.msra.mxu0 %v1283
      %1304 = vmatprep.subr.mxu0 0.0
      %1305 = vmatpush1.msra.mxu0 %v1282
      %1306 = vmatprep.subr.mxu0 0.0
      %1307 = vmatpush1.msra.mxu0 %v1281
      %1308 = vmatprep.subr.mxu0 0.0
      %1309 = vmatpush1.msra.mxu0 %v1280
      %1310 = vmatprep.subr.mxu0 0.0
      %1311 = vmatpush1.msra.mxu0 %v1279
      %1312 = vmatprep.subr.mxu0 0.0
      %1313 = vmatpush1.msra.mxu0 %v1278
      %1314 = vmatprep.subr.mxu0 0.0
      %1315 = vmatpush1.msra.mxu0 %v1277
      %1316 = vmatprep.subr.mxu0 0.0
      %1317 = vmatpush1.msra.mxu0 %v1276
      %1318 = vmatprep.subr.mxu0 0.0
      %1319 = vmatpush1.msra.mxu0 %v1275
      %1320 = vmatprep.subr.mxu0 0.0
      %1321 = vmatpush1.msra.mxu0 %v1274
      %1322 = vmatprep.subr.mxu0 0.0
      %1323 = vmatpush2.msra.mxu0 0.0
      %1324 = vmatprep.subr.mxu0 0.0
      %1325 = vmatpush2.msra.mxu0 0.0
      %1326 = vmatprep.subr.mxu0 0.0
      %1327 = vmatpush2.msra.mxu0 0.0
      %1328 = vmatprep.subr.mxu0 0.0
      %1329 = vmatpush2.msra.mxu0 0.0
      %1330 = vmatprep.subr.mxu0 0.0
      %1331 = vmatpush2.msra.mxu0 0.0
      %1332 = vmatprep.subr.mxu0 0.0
      %1333 = vmatpush2.msra.mxu0 0.0
      %1334 = vmatprep.subr.mxu0 0.0
      %1335 = vmatpush2.msra.mxu0 0.0
      %1336 = vmatprep.subr.mxu0 0.0
      %1337 = vmatpush2.msra.mxu0 0.0
      %1338 = vmatprep.subr.mxu0 0.0
      %1339 = vmatpush2.msra.mxu0 0.0
      %1340 = vmatprep.subr.mxu0 0.0
      %1341 = vmatpush2.msra.mxu0 0.0
      %1342 = vmatprep.subr.mxu0 0.0
      %1343 = vmatpush2.msra.mxu0 0.0
      %1344 = vmatprep.subr.mxu0 0.0
      %1345 = vmatpush2.msra.mxu0 0.0
      %1346 = vmatprep.subr.mxu0 0.0
      %1347 = vmatpush2.msra.mxu0 0.0
      %1348 = vmatprep.subr.mxu0 0.0
      %1349 = vmatpush2.msra.mxu0 0.0
      %1350 = vmatprep.subr.mxu0 0.0
      %1351 = vmatpush2.msra.mxu0 0.0
      %1352 = vmatprep.subr.mxu0 0.0
      %1353 = vmatpush2.msra.mxu0 0.0
      %1354 = vmatprep.mubr.f32.mxu0 0.0
      %1355 = vmatmul.mubr.f32.gmra.mxu0 %v1261
      %v1356 = vpop.f32.mrf.mxu0
      %v1357 = vadd.f32 %v683, %v1356
      %v1358 = vpop.f32.mrf.mxu0
      %1359 = vmatprep.mubr.f32.mxu0 0.0
      %1360 = vmatmul.mubr.f32.gmra.mxu0 %v1262
      %v1361 = vpop.f32.mrf.mxu0
      %v1362 = vadd.f32 %v689, %v1361
      %v1363 = vpop.f32.mrf.mxu0
      %1364 = vmatprep.mubr.f32.mxu0 0.0
      %1365 = vmatmul.mubr.f32.gmra.mxu0 %v1263
      %v1366 = vpop.f32.mrf.mxu0
      %v1367 = vadd.f32 %v695, %v1366
      %v1368 = vpop.f32.mrf.mxu0
      %1369 = vmatprep.mubr.f32.mxu0 0.0
      %1370 = vmatmul.mubr.f32.gmra.mxu0 %v1264
      %v1371 = vpop.f32.mrf.mxu0
      %v1372 = vadd.f32 %v701, %v1371
      %v1373 = vpop.f32.mrf.mxu0
      %1374 = vmatprep.mubr.f32.mxu0 0.0
      %1375 = vmatmul.mubr.f32.gmra.mxu0 %v1265
      %v1376 = vpop.f32.mrf.mxu0
      %v1377 = vadd.f32 %v707, %v1376
      %v1378 = vpop.f32.mrf.mxu0
      %1379 = vmatprep.mubr.f32.mxu0 0.0
      %1380 = vmatmul.mubr.f32.gmra.mxu0 %v1266
      %v1381 = vpop.f32.mrf.mxu0
      %v1382 = vadd.f32 %v713, %v1381
      %v1383 = vpop.f32.mrf.mxu0
      %1384 = vmatprep.mubr.f32.mxu0 0.0
      %1385 = vmatmul.mubr.f32.gmra.mxu0 %v1267
      %v1386 = vpop.f32.mrf.mxu0
      %v1387 = vadd.f32 %v719, %v1386
      %v1388 = vpop.f32.mrf.mxu0
      %1389 = vmatprep.mubr.f32.mxu0 0.0
      %1390 = vmatmul.mubr.f32.gmra.mxu0 %v1268
      %v1391 = vpop.f32.mrf.mxu0
      %v1392 = vadd.f32 %v725, %v1391
      %v1393 = vpop.f32.mrf.mxu0
      %1394 = vmatprep.mubr.f32.mxu0 0.0
      %1395 = vmatmul.mubr.f32.gmra.mxu0 %v1269
      %v1396 = vpop.f32.mrf.mxu0
      %v1397 = vadd.f32 %v731, %v1396
      %v1398 = vpop.f32.mrf.mxu0
      %1399 = vmatprep.mubr.f32.mxu0 0.0
      %1400 = vmatmul.mubr.f32.gmra.mxu0 %v1270
      %v1401 = vpop.f32.mrf.mxu0
      %v1402 = vadd.f32 %v737, %v1401
      %v1403 = vpop.f32.mrf.mxu0
      %1404 = vmatprep.mubr.f32.mxu0 0.0
      %1405 = vmatmul.mubr.f32.gmra.mxu0 %v1271
      %v1406 = vpop.f32.mrf.mxu0
      %v1407 = vadd.f32 %v743, %v1406
      %v1408 = vpop.f32.mrf.mxu0
      %1409 = vmatprep.mubr.f32.mxu0 0.0
      %1410 = vmatmul.mubr.f32.gmra.mxu0 %v1272
      %v1411 = vpop.f32.mrf.mxu0
      %v1412 = vadd.f32 %v749, %v1411
      %v1413 = vpop.f32.mrf.mxu0
      %1414 = vmatprep.mubr.f32.mxu0 0.0
      %1415 = vmatmul.mubr.f32.gmra.mxu0 %v1273
      %v1416 = vpop.f32.mrf.mxu0
      %v1417 = vadd.f32 %v755, %v1416
      %v1418 = vpop.f32.mrf.mxu0
      %1419 = vdwg.mxu0
      %v1420 = vmax.f32 %v1357, 0.0
      %v1421 = vmax.f32 %v1362, 0.0
      %v1422 = vmax.f32 %v1367, 0.0
      %v1423 = vmax.f32 %v1372, 0.0
      %v1424 = vmax.f32 %v1377, 0.0
      %v1425 = vmax.f32 %v1382, 0.0
      %v1426 = vmax.f32 %v1387, 0.0
      %v1427 = vmax.f32 %v1392, 0.0
      %v1428 = vmax.f32 %v1397, 0.0
      %v1429 = vmax.f32 %v1402, 0.0
      %v1430 = vmax.f32 %v1407, 0.0
      %v1431 = vmax.f32 %v1412, 0.0
      %v1432 = vmax.f32 %v1417, 0.0
      %v1433 = vld [vmem:[%s9] sm:$0xff]
      %v1434 = vld [vmem:[%s9 + $0x8] sm:$0xff]
      %v1435 = vld [vmem:[%s9 + $0x10] sm:$0xff]
      %v1436 = vld [vmem:[%s9 + $0x18] sm:$0xff]
      %v1437 = vld [vmem:[%s9 + $0x20] sm:$0xff]
      %v1438 = vld [vmem:[%s9 + $0x28] sm:$0xff]
      %v1439 = vld [vmem:[%s9 + $0x30] sm:$0xff]
      %v1440 = vld [vmem:[%s9 + $0x38] sm:$0xff]
      %v1441 = vld [vmem:[%s9 + $0x40] sm:$0xff]
      %v1442 = vld [vmem:[%s9 + $0x48] sm:$0xff]
      %v1443 = vld [vmem:[%s9 + $0x50] sm:$0xff]
      %v1444 = vld [vmem:[%s9 + $0x58] sm:$0xff]
      %v1445 = vld [vmem:[%s9 + $0x60] sm:$0xff]
      %v1446 = vld [vmem:[%s9 + $0x68] sm:$0xff]
      %v1447 = vld [vmem:[%s9 + $0x70] sm:$0xff]
      %v1448 = vld [vmem:[%s9 + $0x78] sm:$0xff]
      %v1449 = vld [vmem:[%s10] sm:$0x1]
      %v1451 = vlaneseq
      %v1452 = vshrl.u32 %v1451, 7
      %v1453 = vsub.s32 0, %v1452
      %v1454 = vrot.slane %v1449, %v1453
      %1456 = vmatprep.subr.mxu0 0.0
      %1457 = vmatpush1.msra.mxu0 %v1448
      %1458 = vmatprep.subr.mxu0 0.0
      %1459 = vmatpush1.msra.mxu0 %v1447
      %1460 = vmatprep.subr.mxu0 0.0
      %1461 = vmatpush1.msra.mxu0 %v1446
      %1462 = vmatprep.subr.mxu0 0.0
      %1463 = vmatpush1.msra.mxu0 %v1445
      %1464 = vmatprep.subr.mxu0 0.0
      %1465 = vmatpush1.msra.mxu0 %v1444
      %1466 = vmatprep.subr.mxu0 0.0
      %1467 = vmatpush1.msra.mxu0 %v1443
      %1468 = vmatprep.subr.mxu0 0.0
      %1469 = vmatpush1.msra.mxu0 %v1442
      %1470 = vmatprep.subr.mxu0 0.0
      %1471 = vmatpush1.msra.mxu0 %v1441
      %1472 = vmatprep.subr.mxu0 0.0
      %1473 = vmatpush1.msra.mxu0 %v1440
      %1474 = vmatprep.subr.mxu0 0.0
      %1475 = vmatpush1.msra.mxu0 %v1439
      %1476 = vmatprep.subr.mxu0 0.0
      %1477 = vmatpush1.msra.mxu0 %v1438
      %1478 = vmatprep.subr.mxu0 0.0
      %1479 = vmatpush1.msra.mxu0 %v1437
      %1480 = vmatprep.subr.mxu0 0.0
      %1481 = vmatpush1.msra.mxu0 %v1436
      %1482 = vmatprep.subr.mxu0 0.0
      %1483 = vmatpush1.msra.mxu0 %v1435
      %1484 = vmatprep.subr.mxu0 0.0
      %1485 = vmatpush1.msra.mxu0 %v1434
      %1486 = vmatprep.subr.mxu0 0.0
      %1487 = vmatpush1.msra.mxu0 %v1433
      %1488 = vmatprep.subr.mxu0 0.0
      %1489 = vmatpush2.msra.mxu0 0.0
      %1490 = vmatprep.subr.mxu0 0.0
      %1491 = vmatpush2.msra.mxu0 0.0
      %1492 = vmatprep.subr.mxu0 0.0
      %1493 = vmatpush2.msra.mxu0 0.0
      %1494 = vmatprep.subr.mxu0 0.0
      %1495 = vmatpush2.msra.mxu0 0.0
      %1496 = vmatprep.subr.mxu0 0.0
      %1497 = vmatpush2.msra.mxu0 0.0
      %1498 = vmatprep.subr.mxu0 0.0
      %1499 = vmatpush2.msra.mxu0 0.0
      %1500 = vmatprep.subr.mxu0 0.0
      %1501 = vmatpush2.msra.mxu0 0.0
      %1502 = vmatprep.subr.mxu0 0.0
      %1503 = vmatpush2.msra.mxu0 0.0
      %1504 = vmatprep.subr.mxu0 0.0
      %1505 = vmatpush2.msra.mxu0 0.0
      %1506 = vmatprep.subr.mxu0 0.0
      %1507 = vmatpush2.msra.mxu0 0.0
      %1508 = vmatprep.subr.mxu0 0.0
      %1509 = vmatpush2.msra.mxu0 0.0
      %1510 = vmatprep.subr.mxu0 0.0
      %1511 = vmatpush2.msra.mxu0 0.0
      %1512 = vmatprep.subr.mxu0 0.0
      %1513 = vmatpush2.msra.mxu0 0.0
      %1514 = vmatprep.subr.mxu0 0.0
      %1515 = vmatpush2.msra.mxu0 0.0
      %1516 = vmatprep.subr.mxu0 0.0
      %1517 = vmatpush2.msra.mxu0 0.0
      %1518 = vmatprep.subr.mxu0 0.0
      %1519 = vmatpush2.msra.mxu0 0.0
      %1520 = vmatprep.mubr.f32.mxu0 0.0
      %1521 = vmatmul.mubr.f32.gmra.mxu0 %v1420
      %v1522 = vpop.f32.mrf.mxu0
      %v1523 = vadd.f32 %v1454, %v1522
      %v1524 = vpop.f32.mrf.mxu0
      %1525 = vmatprep.mubr.f32.mxu0 0.0
      %1526 = vmatmul.mubr.f32.gmra.mxu0 %v1421
      %v1527 = vpop.f32.mrf.mxu0
      %v1528 = vadd.f32 %v1454, %v1527
      %v1529 = vpop.f32.mrf.mxu0
      %1530 = vmatprep.mubr.f32.mxu0 0.0
      %1531 = vmatmul.mubr.f32.gmra.mxu0 %v1422
      %v1532 = vpop.f32.mrf.mxu0
      %v1533 = vadd.f32 %v1454, %v1532
      %v1534 = vpop.f32.mrf.mxu0
      %1535 = vmatprep.mubr.f32.mxu0 0.0
      %1536 = vmatmul.mubr.f32.gmra.mxu0 %v1423
      %v1537 = vpop.f32.mrf.mxu0
      %v1538 = vadd.f32 %v1454, %v1537
      %v1539 = vpop.f32.mrf.mxu0
      %1540 = vmatprep.mubr.f32.mxu0 0.0
      %1541 = vmatmul.mubr.f32.gmra.mxu0 %v1424
      %v1542 = vpop.f32.mrf.mxu0
      %v1543 = vadd.f32 %v1454, %v1542
      %v1544 = vpop.f32.mrf.mxu0
      %1545 = vmatprep.mubr.f32.mxu0 0.0
      %1546 = vmatmul.mubr.f32.gmra.mxu0 %v1425
      %v1547 = vpop.f32.mrf.mxu0
      %v1548 = vadd.f32 %v1454, %v1547
      %v1549 = vpop.f32.mrf.mxu0
      %1550 = vmatprep.mubr.f32.mxu0 0.0
      %1551 = vmatmul.mubr.f32.gmra.mxu0 %v1426
      %v1552 = vpop.f32.mrf.mxu0
      %v1553 = vadd.f32 %v1454, %v1552
      %v1554 = vpop.f32.mrf.mxu0
      %1555 = vmatprep.mubr.f32.mxu0 0.0
      %1556 = vmatmul.mubr.f32.gmra.mxu0 %v1427
      %v1557 = vpop.f32.mrf.mxu0
      %v1558 = vadd.f32 %v1454, %v1557
      %v1559 = vpop.f32.mrf.mxu0
      %1560 = vmatprep.mubr.f32.mxu0 0.0
      %1561 = vmatmul.mubr.f32.gmra.mxu0 %v1428
      %v1562 = vpop.f32.mrf.mxu0
      %v1563 = vadd.f32 %v1454, %v1562
      %v1564 = vpop.f32.mrf.mxu0
      %1565 = vmatprep.mubr.f32.mxu0 0.0
      %1566 = vmatmul.mubr.f32.gmra.mxu0 %v1429
      %v1567 = vpop.f32.mrf.mxu0
      %v1568 = vadd.f32 %v1454, %v1567
      %v1569 = vpop.f32.mrf.mxu0
      %1570 = vmatprep.mubr.f32.mxu0 0.0
      %1571 = vmatmul.mubr.f32.gmra.mxu0 %v1430
      %v1572 = vpop.f32.mrf.mxu0
      %v1573 = vadd.f32 %v1454, %v1572
      %v1574 = vpop.f32.mrf.mxu0
      %1575 = vmatprep.mubr.f32.mxu0 0.0
      %1576 = vmatmul.mubr.f32.gmra.mxu0 %v1431
      %v1577 = vpop.f32.mrf.mxu0
      %v1578 = vadd.f32 %v1454, %v1577
      %v1579 = vpop.f32.mrf.mxu0
      %1580 = vmatprep.mubr.f32.mxu0 0.0
      %1581 = vmatmul.mubr.f32.gmra.mxu0 %v1432
      %v1582 = vpop.f32.mrf.mxu0
      %v1583 = vadd.f32 %v1454, %v1582
      %v1584 = vpop.f32.mrf.mxu0
      %1585 = vdwg.mxu0
      %v1586 = vmax.f32 %v1523, 0.0
      %v1587 = vmax.f32 %v1528, 0.0
      %v1588 = vmax.f32 %v1533, 0.0
      %v1589 = vmax.f32 %v1538, 0.0
      %v1590 = vmax.f32 %v1543, 0.0
      %v1591 = vmax.f32 %v1548, 0.0
      %v1592 = vmax.f32 %v1553, 0.0
      %v1593 = vmax.f32 %v1558, 0.0
      %v1594 = vmax.f32 %v1563, 0.0
      %v1595 = vmax.f32 %v1568, 0.0
      %v1596 = vmax.f32 %v1573, 0.0
      %v1597 = vmax.f32 %v1578, 0.0
      %v1598 = vmax.f32 %v1583, 0.0
      %v1599 = vld [vmem:[%s11] sm:$0xff]
      %v1600 = vld [vmem:[%s11 + $0x8] sm:$0xff]
      %v1601 = vld [vmem:[%s11 + $0x10] sm:$0xff]
      %v1602 = vld [vmem:[%s11 + $0x18] sm:$0xff]
      %v1603 = vld [vmem:[%s11 + $0x20] sm:$0xff]
      %v1604 = vld [vmem:[%s11 + $0x28] sm:$0xff]
      %v1605 = vld [vmem:[%s11 + $0x30] sm:$0xff]
      %v1606 = vld [vmem:[%s11 + $0x38] sm:$0xff]
      %v1607 = vld [vmem:[%s11 + $0x40] sm:$0xff]
      %v1608 = vld [vmem:[%s11 + $0x48] sm:$0xff]
      %v1609 = vld [vmem:[%s11 + $0x50] sm:$0xff]
      %v1610 = vld [vmem:[%s11 + $0x58] sm:$0xff]
      %v1611 = vld [vmem:[%s11 + $0x60] sm:$0xff]
      %v1612 = vld [vmem:[%s11 + $0x68] sm:$0xff]
      %v1613 = vld [vmem:[%s11 + $0x70] sm:$0xff]
      %v1614 = vld [vmem:[%s11 + $0x78] sm:$0xff]
      %v1615 = vld [vmem:[%s12] sm:$0x1]
      %v1617 = vlaneseq
      %v1618 = vshrl.u32 %v1617, 7
      %v1619 = vsub.s32 0, %v1618
      %v1620 = vrot.slane %v1615, %v1619
      %1622 = vmatprep.subr.mxu0 0.0
      %1623 = vmatpush1.msra.mxu0 %v1614
      %1624 = vmatprep.subr.mxu0 0.0
      %1625 = vmatpush1.msra.mxu0 %v1613
      %1626 = vmatprep.subr.mxu0 0.0
      %1627 = vmatpush1.msra.mxu0 %v1612
      %1628 = vmatprep.subr.mxu0 0.0
      %1629 = vmatpush1.msra.mxu0 %v1611
      %1630 = vmatprep.subr.mxu0 0.0
      %1631 = vmatpush1.msra.mxu0 %v1610
      %1632 = vmatprep.subr.mxu0 0.0
      %1633 = vmatpush1.msra.mxu0 %v1609
      %1634 = vmatprep.subr.mxu0 0.0
      %1635 = vmatpush1.msra.mxu0 %v1608
      %1636 = vmatprep.subr.mxu0 0.0
      %1637 = vmatpush1.msra.mxu0 %v1607
      %1638 = vmatprep.subr.mxu0 0.0
      %1639 = vmatpush1.msra.mxu0 %v1606
      %1640 = vmatprep.subr.mxu0 0.0
      %1641 = vmatpush1.msra.mxu0 %v1605
      %1642 = vmatprep.subr.mxu0 0.0
      %1643 = vmatpush1.msra.mxu0 %v1604
      %1644 = vmatprep.subr.mxu0 0.0
      %1645 = vmatpush1.msra.mxu0 %v1603
      %1646 = vmatprep.subr.mxu0 0.0
      %1647 = vmatpush1.msra.mxu0 %v1602
      %1648 = vmatprep.subr.mxu0 0.0
      %1649 = vmatpush1.msra.mxu0 %v1601
      %1650 = vmatprep.subr.mxu0 0.0
      %1651 = vmatpush1.msra.mxu0 %v1600
      %1652 = vmatprep.subr.mxu0 0.0
      %1653 = vmatpush1.msra.mxu0 %v1599
      %1654 = vmatprep.subr.mxu0 0.0
      %1655 = vmatpush2.msra.mxu0 0.0
      %1656 = vmatprep.subr.mxu0 0.0
      %1657 = vmatpush2.msra.mxu0 0.0
      %1658 = vmatprep.subr.mxu0 0.0
      %1659 = vmatpush2.msra.mxu0 0.0
      %1660 = vmatprep.subr.mxu0 0.0
      %1661 = vmatpush2.msra.mxu0 0.0
      %1662 = vmatprep.subr.mxu0 0.0
      %1663 = vmatpush2.msra.mxu0 0.0
      %1664 = vmatprep.subr.mxu0 0.0
      %1665 = vmatpush2.msra.mxu0 0.0
      %1666 = vmatprep.subr.mxu0 0.0
      %1667 = vmatpush2.msra.mxu0 0.0
      %1668 = vmatprep.subr.mxu0 0.0
      %1669 = vmatpush2.msra.mxu0 0.0
      %1670 = vmatprep.subr.mxu0 0.0
      %1671 = vmatpush2.msra.mxu0 0.0
      %1672 = vmatprep.subr.mxu0 0.0
      %1673 = vmatpush2.msra.mxu0 0.0
      %1674 = vmatprep.subr.mxu0 0.0
      %1675 = vmatpush2.msra.mxu0 0.0
      %1676 = vmatprep.subr.mxu0 0.0
      %1677 = vmatpush2.msra.mxu0 0.0
      %1678 = vmatprep.subr.mxu0 0.0
      %1679 = vmatpush2.msra.mxu0 0.0
      %1680 = vmatprep.subr.mxu0 0.0
      %1681 = vmatpush2.msra.mxu0 0.0
      %1682 = vmatprep.subr.mxu0 0.0
      %1683 = vmatpush2.msra.mxu0 0.0
      %1684 = vmatprep.subr.mxu0 0.0
      %1685 = vmatpush2.msra.mxu0 0.0
      %1686 = vmatprep.mubr.f32.mxu0 0.0
      %1687 = vmatmul.mubr.f32.gmra.mxu0 %v1586
      %v1688 = vpop.f32.mrf.mxu0
      %v1689 = vadd.f32 %v1620, %v1688
      %v1690 = vpop.f32.mrf.mxu0
      %1691 = vmatprep.mubr.f32.mxu0 0.0
      %1692 = vmatmul.mubr.f32.gmra.mxu0 %v1587
      %v1693 = vpop.f32.mrf.mxu0
      %v1694 = vadd.f32 %v1620, %v1693
      %v1695 = vpop.f32.mrf.mxu0
      %1696 = vmatprep.mubr.f32.mxu0 0.0
      %1697 = vmatmul.mubr.f32.gmra.mxu0 %v1588
      %v1698 = vpop.f32.mrf.mxu0
      %v1699 = vadd.f32 %v1620, %v1698
      %v1700 = vpop.f32.mrf.mxu0
      %1701 = vmatprep.mubr.f32.mxu0 0.0
      %1702 = vmatmul.mubr.f32.gmra.mxu0 %v1589
      %v1703 = vpop.f32.mrf.mxu0
      %v1704 = vadd.f32 %v1620, %v1703
      %v1705 = vpop.f32.mrf.mxu0
      %1706 = vmatprep.mubr.f32.mxu0 0.0
      %1707 = vmatmul.mubr.f32.gmra.mxu0 %v1590
      %v1708 = vpop.f32.mrf.mxu0
      %v1709 = vadd.f32 %v1620, %v1708
      %v1710 = vpop.f32.mrf.mxu0
      %1711 = vmatprep.mubr.f32.mxu0 0.0
      %1712 = vmatmul.mubr.f32.gmra.mxu0 %v1591
      %v1713 = vpop.f32.mrf.mxu0
      %v1714 = vadd.f32 %v1620, %v1713
      %v1715 = vpop.f32.mrf.mxu0
      %1716 = vmatprep.mubr.f32.mxu0 0.0
      %1717 = vmatmul.mubr.f32.gmra.mxu0 %v1592
      %v1718 = vpop.f32.mrf.mxu0
      %v1719 = vadd.f32 %v1620, %v1718
      %v1720 = vpop.f32.mrf.mxu0
      %1721 = vmatprep.mubr.f32.mxu0 0.0
      %1722 = vmatmul.mubr.f32.gmra.mxu0 %v1593
      %v1723 = vpop.f32.mrf.mxu0
      %v1724 = vadd.f32 %v1620, %v1723
      %v1725 = vpop.f32.mrf.mxu0
      %1726 = vmatprep.mubr.f32.mxu0 0.0
      %1727 = vmatmul.mubr.f32.gmra.mxu0 %v1594
      %v1728 = vpop.f32.mrf.mxu0
      %v1729 = vadd.f32 %v1620, %v1728
      %v1730 = vpop.f32.mrf.mxu0
      %1731 = vmatprep.mubr.f32.mxu0 0.0
      %1732 = vmatmul.mubr.f32.gmra.mxu0 %v1595
      %v1733 = vpop.f32.mrf.mxu0
      %v1734 = vadd.f32 %v1620, %v1733
      %v1735 = vpop.f32.mrf.mxu0
      %1736 = vmatprep.mubr.f32.mxu0 0.0
      %1737 = vmatmul.mubr.f32.gmra.mxu0 %v1596
      %v1738 = vpop.f32.mrf.mxu0
      %v1739 = vadd.f32 %v1620, %v1738
      %v1740 = vpop.f32.mrf.mxu0
      %1741 = vmatprep.mubr.f32.mxu0 0.0
      %1742 = vmatmul.mubr.f32.gmra.mxu0 %v1597
      %v1743 = vpop.f32.mrf.mxu0
      %v1744 = vadd.f32 %v1620, %v1743
      %v1745 = vpop.f32.mrf.mxu0
      %1746 = vmatprep.mubr.f32.mxu0 0.0
      %1747 = vmatmul.mubr.f32.gmra.mxu0 %v1598
      %v1748 = vpop.f32.mrf.mxu0
      %v1749 = vadd.f32 %v1620, %v1748
      %v1750 = vpop.f32.mrf.mxu0
      %1751 = vdwg.mxu0
      %1752 = vst.msk [vmem:[%s464] sm:$0xff] %vm759, %v1689
      %1753 = vst.msk [vmem:[%s464 + $0x8] sm:$0xff] %vm759, %v1694
      %1754 = vst.msk [vmem:[%s464 + $0x10] sm:$0xff] %vm759, %v1699
      %1755 = vst.msk [vmem:[%s464 + $0x18] sm:$0xff] %vm759, %v1704
      %1756 = vst.msk [vmem:[%s464 + $0x20] sm:$0xff] %vm759, %v1709
      %1757 = vst.msk [vmem:[%s464 + $0x28] sm:$0xff] %vm759, %v1714
      %1758 = vst.msk [vmem:[%s464 + $0x30] sm:$0xff] %vm759, %v1719
      %1759 = vst.msk [vmem:[%s464 + $0x38] sm:$0xff] %vm759, %v1724
      %1760 = vst.msk [vmem:[%s464 + $0x40] sm:$0xff] %vm759, %v1729
      %1761 = vst.msk [vmem:[%s464 + $0x48] sm:$0xff] %vm759, %v1734
      %1762 = vst.msk [vmem:[%s464 + $0x50] sm:$0xff] %vm759, %v1739
      %1763 = vst.msk [vmem:[%s464 + $0x58] sm:$0xff] %vm759, %v1744
      %1764 = vst.msk [vmem:[%s464 + $0x60] sm:$0xff] %vm759, %v1749
      %s1765 = smul.u32 13, %s24
      %p1766 = scmp.lt.s32.totalorder %s1765, 25
      %s1767 = scalar_select %p1766, %s1765, 25
      %s1768 = smul.addr %s1767, 8
      %s1769 = scalar_lea.vmem %s13, %s1768
      // Predicated region
      $region73: #{tpu_custom_call.1} parent=71 // pred_check
        %p1770 = pneg %p325
      $region74: #{tpu_custom_call.1} parent=71 // pred_check_branch
        %1772 = sbr.rel (%p1770) target = $region76
      $region75: #{tpu_custom_call.1} parent=71 // pred_region
        %s1773 = smul.u32 13, %s24
      $region76: #{tpu_custom_call.1} parent=71 // pred_fallthru
        _
    $region72: #{tpu_custom_call.1} parent=5 // pred_fallthru
      _
    %p1774 = scmp.le.s32.totalorder 2, %s19
    // Predicated region
    $region77: #{tpu_custom_call.1} parent=5 // pred_check
      %p1775 = pneg %p1774
    $region78: #{tpu_custom_call.1} parent=5 // pred_check_branch
      %1777 = sbr.rel (%p1775) target = $region80
    $region79: #{tpu_custom_call.1} parent=5 // pred_region
      %s1778 = ssub.s32 %s19, 2
      // Predicated region
      $region81: #{tpu_custom_call.1} parent=79 // pred_check
        %p1779 = pneg %p331
      $region82: #{tpu_custom_call.1} parent=79 // pred_check_branch
        %1781 = sbr.rel (%p1779) target = $region84
      $region83: #{tpu_custom_call.1} parent=79 // pred_region
        %s1782 = smul.u32 13, %s25
        %p1783 = scmp.lt.s32.totalorder %s1782, 25
        %s1784 = scalar_select %p1783, %s1782, 25
        %s1785 = smul.addr %s1784, 8
        %s1786 = scalar_lea.vmem %s13, %s1785
      $region84: #{tpu_custom_call.1} parent=79 // pred_fallthru
        _
    $region80: #{tpu_custom_call.1} parent=5 // pred_fallthru
      _
  $region6: #{tpu_custom_call.1} parent=0 // loop_footer
    %s23 = sadd.s32 1, %s19
  $region7: #{tpu_custom_call.1} parent=0 // loop_footer_branch
    %18 = sbr.rel target = $region3
  $region8: #{tpu_custom_call.1} parent=0 // loop_exit
    _

</llo_original>
